<compile_context>
chip_gen: v6e
topology: v6e:2x2x1
jax: 0.10.0
libtpu: 0.0.40
codegen_flags: <defaults>
</compile_context>

<pallas_src>
import functools

import jax
import jax.numpy as jnp
from jax.experimental import pallas as pl
from jax.experimental.pallas import tpu as pltpu


# ----------------------------- Pallas kernels ------------------------------------ #

def _conv_stats_kernel(p_ref, w_ref, y_ref, sum_ref, sq_ref):
    """One M-tile of the conv matmul + per-tile BN partial statistics.

    p_ref:   (TM, Kp)    bf16 im2col patches (K zero-padded to 128 lanes)
    w_ref:   (Kp, Cp)    bf16 weights (K rows / Cout cols zero-padded)
    y_ref:   (TM, Cp)    bf16 conv output tile
    sum_ref: (1, 1, Cp)  f32  per-tile channel sum
    sq_ref:  (1, 1, Cp)  f32  per-tile channel sum of squares
    """
    y = jnp.dot(p_ref[...], w_ref[...], preferred_element_type=jnp.float32)
    y_ref[...] = y.astype(y_ref.dtype)
    sum_ref[...] = jnp.sum(y, axis=0, keepdims=True)[None]
    sq_ref[...] = jnp.sum(y * y, axis=0, keepdims=True)[None]


def _bn_relu_apply_kernel(y_ref, scale_ref, shift_ref, o_ref):
    """Apply precomputed per-channel affine (gamma*rsqrt(var+eps), beta - mean*scale) + ReLU."""
    y = y_ref[...].astype(jnp.float32)
    o_ref[...] = jnp.maximum(y * scale_ref[...] + shift_ref[...], 0.0)


# ------------------------------- JAX glue ----------------------------------------- #

def _round_up(x, m):
    return ((x + m - 1) // m) * m


@functools.lru_cache(maxsize=None)
def _gen_tile_params():
    """(block_m, vmem_limit_bytes) chosen per TPU generation."""
    try:
        vmem_cap = pltpu.get_tpu_info().vmem_capacity_bytes
    except Exception:
        vmem_cap = 64 * 1024 * 1024
    if vmem_cap >= 100 * 1024 * 1024:            # v5e / v6e: 128 MiB VMEM per core
        return 2048, 96 * 1024 * 1024
    return 1024, 44 * 1024 * 1024                # v7x: 64 MiB physical VMEM


def _im2col(x_nhwc, k, pad, stride, dilation):
    # TODO(synk): build the 3x3 patches per-M-tile inside the Pallas pipeline (halo-band
    # DMA of the NHWC input) to avoid materializing the 9x im2col slab in HBM.
    N, H, W, C = x_nhwc.shape
    eff = (k - 1) * dilation + 1
    Ho = (H + 2 * pad - eff) // stride + 1
    Wo = (W + 2 * pad - eff) // stride + 1
    xp = jnp.pad(x_nhwc, ((0, 0), (pad, pad), (pad, pad), (0, 0)))
    taps = []
    for dy in range(k):
        for dx in range(k):
            ys, xs = dy * dilation, dx * dilation
            taps.append(xp[:, ys: ys + stride * (Ho - 1) + 1: stride,
                              xs: xs + stride * (Wo - 1) + 1: stride, :])
    patches = jnp.stack(taps, axis=3)                    # (N, Ho, Wo, k*k, C)
    return patches.reshape(N * Ho * Wo, k * k * C), (N, Ho, Wo)


def _torch_weight_to_matmul(w):
    # torch Conv2d weight (Cout, Cin, kH, kW) -> (kH*kW*Cin, Cout), matching im2col order
    cout = w.shape[0]
    return jnp.transpose(w, (2, 3, 1, 0)).reshape(-1, cout)


def _conv_with_stats(x_nhwc_bf16, w_oihw, *, pad, stride, dilation):
    """3x3 conv (no bias) as an M-tiled Pallas matmul with a fused BN-stats epilogue.

    Returns (y_padded bf16 (MP, CP), mean (CP,), var (CP,), meta).
    """
    cout = w_oihw.shape[0]
    patches, (n, ho, wo) = _im2col(x_nhwc_bf16, 3, pad, stride, dilation)
    m, k = patches.shape

    kp = _round_up(k, 128)                                  # lane-dense contraction axis
    cp = _round_up(cout, 256 if cout > 128 else 128)        # lane-dense output channels
    block_m, vmem_limit = _gen_tile_params()
    tm = min(block_m, _round_up(m, 16))                     # bf16 packs 16 sublanes
    gm = pl.cdiv(m, tm)
    mp = gm * tm

    patches = jnp.pad(patches, ((0, mp - m), (0, kp - k)))
    wmat = jnp.pad(_torch_weight_to_matmul(w_oihw),
                   ((0, kp - k), (0, cp - cout))).astype(jnp.bfloat16)

    cparams = pltpu.CompilerParams(
        dimension_semantics=("parallel",),                  # shard M tiles across TCs
        vmem_limit_bytes=vmem_limit,
    )

    y, psum, psq = pl.pallas_call(
        _conv_stats_kernel,
        grid=(gm,),
        in_specs=[
            pl.BlockSpec((tm, kp), lambda i: (i, 0)),       # patches tile
            pl.BlockSpec((kp, cp), lambda i: (0, 0)),       # weights resident across grid
        ],
        out_specs=(
            pl.BlockSpec((tm, cp), lambda i: (i, 0)),       # bf16 conv output tile
            pl.BlockSpec((1, 1, cp), lambda i: (i, 0, 0)),  # per-tile sum
            pl.BlockSpec((1, 1, cp), lambda i: (i, 0, 0)),  # per-tile sum of squares
        ),
        out_shape=(
            jax.ShapeDtypeStruct((mp, cp), jnp.bfloat16),
            jax.ShapeDtypeStruct((gm, 1, cp), jnp.float32),
            jax.ShapeDtypeStruct((gm, 1, cp), jnp.float32),
        ),
        compiler_params=cparams,
        cost_estimate=pl.CostEstimate(
            flops=2 * mp * kp * cp,
            transcendentals=0,
            bytes_accessed=mp * kp * 2 + kp * cp * 2 + mp * cp * 2 + 2 * gm * cp * 4,
        ),
    )(patches, wmat)

    # Exact batch statistics from per-tile partials.  Padded M rows and padded
    # K/channel columns contribute zero (valid because the conv bias is dropped).
    mean = jnp.sum(psum, axis=(0, 1)) / m
    var = jnp.maximum(jnp.sum(psq, axis=(0, 1)) / m - mean * mean, 0.0)
    return y, mean, var, (n, ho, wo, m, cout, cp, tm, gm, mp)


def _bn_affine(gamma, beta, mean, var, cout, cp):
    """Fold training-mode BN(mean, var) + (gamma, beta) into per-channel scale/shift."""
    inv = jax.lax.rsqrt(var + 1e-5)
    g = jnp.pad(gamma, (0, cp - cout))
    b = jnp.pad(beta, (0, cp - cout))
    scale = (g * inv).reshape(1, cp).astype(jnp.float32)
    shift = (b - mean * g * inv).reshape(1, cp).astype(jnp.float32)
    return scale, shift


def _bn_relu_apply(y_pad, scale, shift, *, tm, gm, mp, cp):
    """Tiled BN+ReLU apply (final layer only; inner layer is fused into conv2 patches)."""
    _, vmem_limit = _gen_tile_params()
    return pl.pallas_call(
        _bn_relu_apply_kernel,
        grid=(gm,),
        in_specs=[
            pl.BlockSpec((tm, cp), lambda i: (i, 0)),
            pl.BlockSpec((1, cp), lambda i: (0, 0)),
            pl.BlockSpec((1, cp), lambda i: (0, 0)),
        ],
        out_specs=pl.BlockSpec((tm, cp), lambda i: (i, 0)),
        out_shape=jax.ShapeDtypeStruct((mp, cp), jnp.float32),
        compiler_params=pltpu.CompilerParams(
            dimension_semantics=("parallel",),
            vmem_limit_bytes=vmem_limit,
        ),
    )(y_pad, scale, shift)


def init_params(key, in_ch, out_ch):
    k1, k2, k3, k4 = jax.random.split(key, 4)
    return dict(
        w1=jax.random.normal(k1, (out_ch, in_ch, 3, 3), jnp.float32) * 0.1,
        b1=jax.random.normal(k2, (out_ch,), jnp.float32) * 0.05,
        g1=jnp.ones((out_ch,), jnp.float32),
        be1=jnp.zeros((out_ch,), jnp.float32),
        w2=jax.random.normal(k3, (out_ch, out_ch, 3, 3), jnp.float32) * 0.1,
        b2=jax.random.normal(k4, (out_ch,), jnp.float32) * 0.05,
        g2=jnp.ones((out_ch,), jnp.float32),
        be2=jnp.zeros((out_ch,), jnp.float32),
    )


@functools.partial(jax.jit, static_argnames=("dilation",))
def double_dilation_forward(x_nchw, params, dilation=1):
    x = jnp.transpose(x_nchw, (0, 2, 3, 1)).astype(jnp.bfloat16)   # NCHW -> NHWC (MXU operands)
    # NOTE: conv biases (b1, b2) are intentionally unused: training-mode BN subtracts
    # the batch mean immediately after, so a per-channel constant bias cancels exactly.

    # ----- layer 1: conv(3x3, pad=1, s=1) + fused per-tile BN statistics -----
    y1, mean1, var1, (n, h1, w1o, m1, co1, cp1, _, _, _) = _conv_with_stats(
        x, params["w1"], pad=1, stride=1, dilation=1)
    scale1, shift1 = _bn_affine(params["g1"], params["be1"], mean1, var1, co1, cp1)

    # Layer-1 BN+ReLU is applied while forming conv2's patches: the elementwise
    # affine + ReLU + bf16 cast is fused by XLA into the im2col gather/pad, so the
    # standalone apply pass (one full read+write sweep) for the inner layer is gone.
    a1 = jnp.maximum(y1[:m1, :co1].astype(jnp.float32) * scale1[:, :co1] + shift1[:, :co1], 0.0)
    a1 = a1.reshape(n, h1, w1o, co1).astype(jnp.bfloat16)

    # ----- layer 2: conv(3x3, pad=2, s=2, dilation) + fused per-tile BN statistics -----
    y2, mean2, var2, (n2, h2, w2o, m2, co2, cp2, tm2, gm2, mp2) = _conv_with_stats(
        a1, params["w2"], pad=2, stride=2, dilation=dilation)
    scale2, shift2 = _bn_affine(params["g2"], params["be2"], mean2, var2, co2, cp2)

    out = _bn_relu_apply(y2, scale2, shift2, tm=tm2, gm=gm2, mp=mp2, cp=cp2)
    out = out[:m2, :co2].reshape(n2, h2, w2o, co2)
    return jnp.transpose(out, (0, 3, 1, 2))                        # NHWC -> NCHW


# ------------------------------ pure-JAX reference --------------------------------- #

def _reference(x_nchw, params, dilation):
    def conv(x, w, b, pad, stride, dil):
        y = jax.lax.conv_general_dilated(
            x, w, window_strides=(stride, stride),
            padding=[(pad, pad), (pad, pad)], rhs_dilation=(dil, dil),
            dimension_numbers=("NCHW", "OIHW", "NCHW"),
            precision=jax.lax.Precision.HIGHEST)
        return y + b[None, :, None, None]

    def bnr(y, g, be):
        mean = jnp.mean(y, axis=(0, 2, 3), keepdims=True)
        var = jnp.mean((y - mean) ** 2, axis=(0, 2, 3), keepdims=True)
        yn = (y - mean) * jax.lax.rsqrt(var + 1e-5)
        return jnp.maximum(yn * g[None, :, None, None] + be[None, :, None, None], 0.0)

    y1 = bnr(conv(x_nchw, params["w1"], params["b1"], 1, 1, 1), params["g1"], params["be1"])
    return bnr(conv(y1, params["w2"], params["b2"], 2, 2, dilation), params["g2"], params["be2"])


if __name__ == "__main__":
    in_ch, out_ch, dilation = 4, 8, 2
    key = jax.random.PRNGKey(0)
    kx, kp = jax.random.split(key)
    x = jax.random.normal(kx, (2, in_ch, 16, 16), jnp.float32)
    params = init_params(kp, in_ch, out_ch)

    out = double_dilation_forward(x, params, dilation=dilation)
    out = jax.block_until_ready(out)

    ref = _reference(x, params, dilation)
    assert out.shape == ref.shape == (2, out_ch, 8, 8), (out.shape, ref.shape)
    # bf16 MXU operands + bf16 intermediate activations vs the HIGHEST-precision f32
    # reference; training-mode BN re-normalizes so errors stay O(bf16 eps * few sigma).
    if not jnp.allclose(out, ref, atol=5e-2, rtol=5e-2):
        err = float(jnp.max(jnp.abs(out - ref)))
        raise AssertionError(f"Pallas output does not match reference (max abs err {err})")
    print("KERNEL_OK")
</pallas_src>

<mosaic_0001>
module attributes {stable_mosaic.version = 11 : i64} {
  func.func @_conv_stats_kernel(%arg0: i32, %arg1: memref<512x128xbf16, #tpu.memory_space<vmem>>, %arg2: memref<128x128xbf16, #tpu.memory_space<vmem>>, %arg3: memref<512x128xbf16, #tpu.memory_space<vmem>>, %arg4: memref<1x1x128xf32, #tpu.memory_space<vmem>>, %arg5: memref<1x1x128xf32, #tpu.memory_space<vmem>>) attributes {dimension_semantics = [#tpu.dimension_semantics<parallel>], iteration_bounds = array<i64: 1>, scalar_prefetch = 0 : i64, scratch_operands = 0 : i64, tpu.core_type = #tpu.core_type<tc>, window_params = [{transform_indices = @transform_0, window_bounds = array<i64: 512, 128>}, {pipeline_mode = #tpu.pipeline_mode<synchronous>, transform_indices = @transform_1, window_bounds = array<i64: 128, 128>}, {transform_indices = @transform_2, window_bounds = array<i64: 512, 128>}, {transform_indices = @transform_3, window_bounds = array<i64: 1, 1, 128>}, {transform_indices = @transform_4, window_bounds = array<i64: 1, 1, 128>}]} {
    %c0 = arith.constant 0 : index
    %c0_0 = arith.constant 0 : index
    %0 = vector.load %arg1[%c0, %c0_0] : memref<512x128xbf16, #tpu.memory_space<vmem>>, vector<512x128xbf16>
    %c0_1 = arith.constant 0 : index
    %c0_2 = arith.constant 0 : index
    %1 = vector.load %arg2[%c0_1, %c0_2] : memref<128x128xbf16, #tpu.memory_space<vmem>>, vector<128x128xbf16>
    %cst = arith.constant dense<0.000000e+00> : vector<512x128xf32>
    %2 = tpu.matmul %0, %1, %cst {dimension_numbers = #tpu.dot_dimension_numbers<[1], [0], [0], [1], [0, 0, 1, 1], [], []>} : vector<512x128xbf16>, vector<128x128xbf16>, vector<512x128xf32> -> vector<512x128xf32>
    %3 = arith.truncf %2 : vector<512x128xf32> to vector<512x128xbf16>
    %c0_3 = arith.constant 0 : index
    %c0_4 = arith.constant 0 : index
    %4 = vector.load %arg3[%c0_3, %c0_4] : memref<512x128xbf16, #tpu.memory_space<vmem>>, vector<512x128xbf16>
    tpu.vector_store %arg3[%c0_3, %c0_4], %3 {strides = array<i32>} : memref<512x128xbf16, #tpu.memory_space<vmem>>, vector<512x128xbf16>,
    %cst_5 = arith.constant dense<0.000000e+00> : vector<128xf32>
    %5 = vector.multi_reduction <add>, %2, %cst_5 [0] : vector<512x128xf32> to vector<128xf32>
    %6 = vector.shape_cast %5 : vector<128xf32> to vector<1x128xf32>
    %7 = vector.shape_cast %6 : vector<1x128xf32> to vector<1x1x128xf32>
    %c0_6 = arith.constant 0 : index
    %c0_7 = arith.constant 0 : index
    %c0_8 = arith.constant 0 : index
    %8 = vector.load %arg4[%c0_6, %c0_7, %c0_8] : memref<1x1x128xf32, #tpu.memory_space<vmem>>, vector<1x1x128xf32>
    tpu.vector_store %arg4[%c0_6, %c0_7, %c0_8], %7 {strides = array<i32>} : memref<1x1x128xf32, #tpu.memory_space<vmem>>, vector<1x1x128xf32>,
    %9 = arith.mulf %2, %2 : vector<512x128xf32>
    %cst_9 = arith.constant dense<0.000000e+00> : vector<128xf32>
    %10 = vector.multi_reduction <add>, %9, %cst_9 [0] : vector<512x128xf32> to vector<128xf32>
    %11 = vector.shape_cast %10 : vector<128xf32> to vector<1x128xf32>
    %12 = vector.shape_cast %11 : vector<1x128xf32> to vector<1x1x128xf32>
    %c0_10 = arith.constant 0 : index
    %c0_11 = arith.constant 0 : index
    %c0_12 = arith.constant 0 : index
    %13 = vector.load %arg5[%c0_10, %c0_11, %c0_12] : memref<1x1x128xf32, #tpu.memory_space<vmem>>, vector<1x1x128xf32>
    tpu.vector_store %arg5[%c0_10, %c0_11, %c0_12], %12 {strides = array<i32>} : memref<1x1x128xf32, #tpu.memory_space<vmem>>, vector<1x1x128xf32>,
    return
  }
  func.func @transform_0(%arg0: i32) -> (i32, i32) {
    %c0_i32 = arith.constant 0 : i32
    %c0_i32_0 = arith.constant 0 : i32
    return %arg0, %c0_i32 : i32, i32
  }
  func.func @transform_1(%arg0: i32) -> (i32, i32) {
    %c0_i32 = arith.constant 0 : i32
    %c0_i32_0 = arith.constant 0 : i32
    %c0_i32_1 = arith.constant 0 : i32
    return %c0_i32, %c0_i32_0 : i32, i32
  }
  func.func @transform_2(%arg0: i32) -> (i32, i32) {
    %c0_i32 = arith.constant 0 : i32
    %c0_i32_0 = arith.constant 0 : i32
    return %arg0, %c0_i32 : i32, i32
  }
  func.func @transform_3(%arg0: i32) -> (i32, i32, i32) {
    %c0_i32 = arith.constant 0 : i32
    %c0_i32_0 = arith.constant 0 : i32
    %c0_i32_1 = arith.constant 0 : i32
    return %arg0, %c0_i32, %c0_i32_0 : i32, i32, i32
  }
  func.func @transform_4(%arg0: i32) -> (i32, i32, i32) {
    %c0_i32 = arith.constant 0 : i32
    %c0_i32_0 = arith.constant 0 : i32
    %c0_i32_1 = arith.constant 0 : i32
    return %arg0, %c0_i32, %c0_i32_0 : i32, i32, i32
  }
}

module attributes {stable_mosaic.version = 11 : i64} {
  func.func @_conv_stats_kernel(%arg0: i32, %arg1: memref<128x128xbf16, #tpu.memory_space<vmem>>, %arg2: memref<128x128xbf16, #tpu.memory_space<vmem>>, %arg3: memref<128x128xbf16, #tpu.memory_space<vmem>>, %arg4: memref<1x1x128xf32, #tpu.memory_space<vmem>>, %arg5: memref<1x1x128xf32, #tpu.memory_space<vmem>>) attributes {dimension_semantics = [#tpu.dimension_semantics<parallel>], iteration_bounds = array<i64: 1>, scalar_prefetch = 0 : i64, scratch_operands = 0 : i64, tpu.core_type = #tpu.core_type<tc>, window_params = [{transform_indices = @transform_0, window_bounds = array<i64: 128, 128>}, {pipeline_mode = #tpu.pipeline_mode<synchronous>, transform_indices = @transform_1, window_bounds = array<i64: 128, 128>}, {transform_indices = @transform_2, window_bounds = array<i64: 128, 128>}, {transform_indices = @transform_3, window_bounds = array<i64: 1, 1, 128>}, {transform_indices = @transform_4, window_bounds = array<i64: 1, 1, 128>}]} {
    %c0 = arith.constant 0 : index
    %c0_0 = arith.constant 0 : index
    %0 = vector.load %arg1[%c0, %c0_0] : memref<128x128xbf16, #tpu.memory_space<vmem>>, vector<128x128xbf16>
    %c0_1 = arith.constant 0 : index
    %c0_2 = arith.constant 0 : index
    %1 = vector.load %arg2[%c0_1, %c0_2] : memref<128x128xbf16, #tpu.memory_space<vmem>>, vector<128x128xbf16>
    %cst = arith.constant dense<0.000000e+00> : vector<128x128xf32>
    %2 = tpu.matmul %0, %1, %cst {dimension_numbers = #tpu.dot_dimension_numbers<[1], [0], [0], [1], [0, 0, 1, 1], [], []>} : vector<128x128xbf16>, vector<128x128xbf16>, vector<128x128xf32> -> vector<128x128xf32>
    %3 = arith.truncf %2 : vector<128x128xf32> to vector<128x128xbf16>
    %c0_3 = arith.constant 0 : index
    %c0_4 = arith.constant 0 : index
    %4 = vector.load %arg3[%c0_3, %c0_4] : memref<128x128xbf16, #tpu.memory_space<vmem>>, vector<128x128xbf16>
    tpu.vector_store %arg3[%c0_3, %c0_4], %3 {strides = array<i32>} : memref<128x128xbf16, #tpu.memory_space<vmem>>, vector<128x128xbf16>,
    %cst_5 = arith.constant dense<0.000000e+00> : vector<128xf32>
    %5 = vector.multi_reduction <add>, %2, %cst_5 [0] : vector<128x128xf32> to vector<128xf32>
    %6 = vector.shape_cast %5 : vector<128xf32> to vector<1x128xf32>
    %7 = vector.shape_cast %6 : vector<1x128xf32> to vector<1x1x128xf32>
    %c0_6 = arith.constant 0 : index
    %c0_7 = arith.constant 0 : index
    %c0_8 = arith.constant 0 : index
    %8 = vector.load %arg4[%c0_6, %c0_7, %c0_8] : memref<1x1x128xf32, #tpu.memory_space<vmem>>, vector<1x1x128xf32>
    tpu.vector_store %arg4[%c0_6, %c0_7, %c0_8], %7 {strides = array<i32>} : memref<1x1x128xf32, #tpu.memory_space<vmem>>, vector<1x1x128xf32>,
    %9 = arith.mulf %2, %2 : vector<128x128xf32>
    %cst_9 = arith.constant dense<0.000000e+00> : vector<128xf32>
    %10 = vector.multi_reduction <add>, %9, %cst_9 [0] : vector<128x128xf32> to vector<128xf32>
    %11 = vector.shape_cast %10 : vector<128xf32> to vector<1x128xf32>
    %12 = vector.shape_cast %11 : vector<1x128xf32> to vector<1x1x128xf32>
    %c0_10 = arith.constant 0 : index
    %c0_11 = arith.constant 0 : index
    %c0_12 = arith.constant 0 : index
    %13 = vector.load %arg5[%c0_10, %c0_11, %c0_12] : memref<1x1x128xf32, #tpu.memory_space<vmem>>, vector<1x1x128xf32>
    tpu.vector_store %arg5[%c0_10, %c0_11, %c0_12], %12 {strides = array<i32>} : memref<1x1x128xf32, #tpu.memory_space<vmem>>, vector<1x1x128xf32>,
    return
  }
  func.func @transform_0(%arg0: i32) -> (i32, i32) {
    %c0_i32 = arith.constant 0 : i32
    %c0_i32_0 = arith.constant 0 : i32
    return %arg0, %c0_i32 : i32, i32
  }
  func.func @transform_1(%arg0: i32) -> (i32, i32) {
    %c0_i32 = arith.constant 0 : i32
    %c0_i32_0 = arith.constant 0 : i32
    %c0_i32_1 = arith.constant 0 : i32
    return %c0_i32, %c0_i32_0 : i32, i32
  }
  func.func @transform_2(%arg0: i32) -> (i32, i32) {
    %c0_i32 = arith.constant 0 : i32
    %c0_i32_0 = arith.constant 0 : i32
    return %arg0, %c0_i32 : i32, i32
  }
  func.func @transform_3(%arg0: i32) -> (i32, i32, i32) {
    %c0_i32 = arith.constant 0 : i32
    %c0_i32_0 = arith.constant 0 : i32
    %c0_i32_1 = arith.constant 0 : i32
    return %arg0, %c0_i32, %c0_i32_0 : i32, i32, i32
  }
  func.func @transform_4(%arg0: i32) -> (i32, i32, i32) {
    %c0_i32 = arith.constant 0 : i32
    %c0_i32_0 = arith.constant 0 : i32
    %c0_i32_1 = arith.constant 0 : i32
    return %arg0, %c0_i32, %c0_i32_0 : i32, i32, i32
  }
}

module attributes {stable_mosaic.version = 11 : i64} {
  func.func @_bn_relu_apply_kernel(%arg0: i32, %arg1: memref<128x128xbf16, #tpu.memory_space<vmem>>, %arg2: memref<1x128xf32, #tpu.memory_space<vmem>>, %arg3: memref<1x128xf32, #tpu.memory_space<vmem>>, %arg4: memref<128x128xf32, #tpu.memory_space<vmem>>) attributes {dimension_semantics = [#tpu.dimension_semantics<parallel>], iteration_bounds = array<i64: 1>, scalar_prefetch = 0 : i64, scratch_operands = 0 : i64, tpu.core_type = #tpu.core_type<tc>, window_params = [{transform_indices = @transform_0, window_bounds = array<i64: 128, 128>}, {pipeline_mode = #tpu.pipeline_mode<synchronous>, transform_indices = @transform_1, window_bounds = array<i64: 1, 128>}, {pipeline_mode = #tpu.pipeline_mode<synchronous>, transform_indices = @transform_2, window_bounds = array<i64: 1, 128>}, {transform_indices = @transform_3, window_bounds = array<i64: 128, 128>}]} {
    %c0 = arith.constant 0 : index
    %c0_0 = arith.constant 0 : index
    %0 = vector.load %arg1[%c0, %c0_0] : memref<128x128xbf16, #tpu.memory_space<vmem>>, vector<128x128xbf16>
    %1 = arith.extf %0 : vector<128x128xbf16> to vector<128x128xf32>
    %c0_1 = arith.constant 0 : index
    %c0_2 = arith.constant 0 : index
    %2 = vector.load %arg2[%c0_1, %c0_2] : memref<1x128xf32, #tpu.memory_space<vmem>>, vector<1x128xf32>
    %3 = vector.broadcast %2 : vector<1x128xf32> to vector<128x128xf32>
    %4 = arith.mulf %1, %3 : vector<128x128xf32>
    %c0_3 = arith.constant 0 : index
    %c0_4 = arith.constant 0 : index
    %5 = vector.load %arg3[%c0_3, %c0_4] : memref<1x128xf32, #tpu.memory_space<vmem>>, vector<1x128xf32>
    %6 = vector.broadcast %5 : vector<1x128xf32> to vector<128x128xf32>
    %7 = arith.addf %4, %6 : vector<128x128xf32>
    %cst = arith.constant 0.000000e+00 : f32
    %8 = vector.broadcast %cst : f32 to vector<128x128xf32>
    %9 = arith.maximumf %7, %8 : vector<128x128xf32>
    %c0_5 = arith.constant 0 : index
    %c0_6 = arith.constant 0 : index
    %10 = vector.load %arg4[%c0_5, %c0_6] : memref<128x128xf32, #tpu.memory_space<vmem>>, vector<128x128xf32>
    tpu.vector_store %arg4[%c0_5, %c0_6], %9 {strides = array<i32>} : memref<128x128xf32, #tpu.memory_space<vmem>>, vector<128x128xf32>,
    return
  }
  func.func @transform_0(%arg0: i32) -> (i32, i32) {
    %c0_i32 = arith.constant 0 : i32
    %c0_i32_0 = arith.constant 0 : i32
    return %arg0, %c0_i32 : i32, i32
  }
  func.func @transform_1(%arg0: i32) -> (i32, i32) {
    %c0_i32 = arith.constant 0 : i32
    %c0_i32_0 = arith.constant 0 : i32
    %c0_i32_1 = arith.constant 0 : i32
    return %c0_i32, %c0_i32_0 : i32, i32
  }
  func.func @transform_2(%arg0: i32) -> (i32, i32) {
    %c0_i32 = arith.constant 0 : i32
    %c0_i32_0 = arith.constant 0 : i32
    %c0_i32_1 = arith.constant 0 : i32
    return %c0_i32, %c0_i32_0 : i32, i32
  }
  func.func @transform_3(%arg0: i32) -> (i32, i32) {
    %c0_i32 = arith.constant 0 : i32
    %c0_i32_0 = arith.constant 0 : i32
    return %arg0, %c0_i32 : i32, i32
  }
}

</mosaic_0001>

<llo_original>
// kernel: double_dilation_forward.3
$region0: #{double_dilation_forward.3}
  #allocation0 [shape = 'u32[]', space=smem, size = 0x4, offset = 0x4, fixed_abs, tag = 'smem constant byte address 0x4 - core index']
  #allocation1 [shape = 'u32[144,128]{1,0:T(1,128)}', space=vmem, size = 0x12000, scoped, tag = 'internal scratch']
  %s0 = inlined_call_operand.vmem [shape: bf16[512,128], index: 0, kind: input, shape index: {}]
  %s1 = inlined_call_operand.vmem [shape: bf16[128,128], index: 1, kind: input, shape index: {}]
  %s2 = inlined_call_operand.vmem [shape: bf16[512,128], index: 2, kind: output, shape index: {0}]
  %s3 = inlined_call_operand.vmem [shape: f32[1,1,128], index: 3, kind: output, shape index: {1}]
  %s4 = inlined_call_operand.vmem [shape: f32[1,1,128], index: 4, kind: output, shape index: {2}]
  %5 = xla_tuple %s2, %s3, %s4
  %s6 = sld [smem:[#allocation0]]
  $region34: #{double_dilation_forward.3} parent=0
    _
  %s8 = ssub.s32 1, %s6
  %s9 = scalar_select 0, %s8, %s6
  // Predicated region
  $region2: #{double_dilation_forward.3} parent=0 // pred_check
    _
  $region3: #{double_dilation_forward.3} parent=0 // pred_check_branch
    %11 = sbr.rel (0) target = $region5
  $region4: #{double_dilation_forward.3} parent=0 // pred_region
    _
  $region5: #{double_dilation_forward.3} parent=0 // pred_fallthru
    _
  // Predicated region
  $region6: #{double_dilation_forward.3} parent=0 // pred_check
    _
  $region7: #{double_dilation_forward.3} parent=0 // pred_check_branch
    %13 = sbr.rel (0) target = $region9
  $region8: #{double_dilation_forward.3} parent=0 // pred_region
    _
  $region9: #{double_dilation_forward.3} parent=0 // pred_fallthru
    _
  %v15 = vld [vmem:[%s0] sm:$0xf]
  %v16 = vld [vmem:[%s0 + $0x4] sm:$0xf]
  %v17 = vld [vmem:[%s0 + $0x8] sm:$0xf]
  %v18 = vld [vmem:[%s0 + $0xc] sm:$0xf]
  %v19 = vld [vmem:[%s0 + $0x10] sm:$0xf]
  %v20 = vld [vmem:[%s0 + $0x14] sm:$0xf]
  %v21 = vld [vmem:[%s0 + $0x18] sm:$0xf]
  %v22 = vld [vmem:[%s0 + $0x1c] sm:$0xf]
  %v23 = vld [vmem:[%s0 + $0x20] sm:$0xf]
  %v24 = vld [vmem:[%s0 + $0x24] sm:$0xf]
  %v25 = vld [vmem:[%s0 + $0x28] sm:$0xf]
  %v26 = vld [vmem:[%s0 + $0x2c] sm:$0xf]
  %v27 = vld [vmem:[%s0 + $0x30] sm:$0xf]
  %v28 = vld [vmem:[%s0 + $0x34] sm:$0xf]
  %v29 = vld [vmem:[%s0 + $0x38] sm:$0xf]
  %v30 = vld [vmem:[%s0 + $0x3c] sm:$0xf]
  %v31 = vld [vmem:[%s0 + $0x40] sm:$0xf]
  %v32 = vld [vmem:[%s0 + $0x44] sm:$0xf]
  %v33 = vld [vmem:[%s0 + $0x48] sm:$0xf]
  %v34 = vld [vmem:[%s0 + $0x4c] sm:$0xf]
  %v35 = vld [vmem:[%s0 + $0x50] sm:$0xf]
  %v36 = vld [vmem:[%s0 + $0x54] sm:$0xf]
  %v37 = vld [vmem:[%s0 + $0x58] sm:$0xf]
  %v38 = vld [vmem:[%s0 + $0x5c] sm:$0xf]
  %v39 = vld [vmem:[%s0 + $0x60] sm:$0xf]
  %v40 = vld [vmem:[%s0 + $0x64] sm:$0xf]
  %v41 = vld [vmem:[%s0 + $0x68] sm:$0xf]
  %v42 = vld [vmem:[%s0 + $0x6c] sm:$0xf]
  %v43 = vld [vmem:[%s0 + $0x70] sm:$0xf]
  %v44 = vld [vmem:[%s0 + $0x74] sm:$0xf]
  %v45 = vld [vmem:[%s0 + $0x78] sm:$0xf]
  %v46 = vld [vmem:[%s0 + $0x7c] sm:$0xf]
  %v47 = vld [vmem:[%s0 + $0x80] sm:$0xf]
  %v48 = vld [vmem:[%s0 + $0x84] sm:$0xf]
  %v49 = vld [vmem:[%s0 + $0x88] sm:$0xf]
  %v50 = vld [vmem:[%s0 + $0x8c] sm:$0xf]
  %v51 = vld [vmem:[%s0 + $0x90] sm:$0xf]
  %v52 = vld [vmem:[%s0 + $0x94] sm:$0xf]
  %v53 = vld [vmem:[%s0 + $0x98] sm:$0xf]
  %v54 = vld [vmem:[%s0 + $0x9c] sm:$0xf]
  %v55 = vld [vmem:[%s0 + $0xa0] sm:$0xf]
  %v56 = vld [vmem:[%s0 + $0xa4] sm:$0xf]
  %v57 = vld [vmem:[%s0 + $0xa8] sm:$0xf]
  %v58 = vld [vmem:[%s0 + $0xac] sm:$0xf]
  %v59 = vld [vmem:[%s0 + $0xb0] sm:$0xf]
  %v60 = vld [vmem:[%s0 + $0xb4] sm:$0xf]
  %v61 = vld [vmem:[%s0 + $0xb8] sm:$0xf]
  %v62 = vld [vmem:[%s0 + $0xbc] sm:$0xf]
  %v63 = vld [vmem:[%s0 + $0xc0] sm:$0xf]
  %v64 = vld [vmem:[%s0 + $0xc4] sm:$0xf]
  %v65 = vld [vmem:[%s0 + $0xc8] sm:$0xf]
  %v66 = vld [vmem:[%s0 + $0xcc] sm:$0xf]
  %v67 = vld [vmem:[%s0 + $0xd0] sm:$0xf]
  %v68 = vld [vmem:[%s0 + $0xd4] sm:$0xf]
  %v69 = vld [vmem:[%s0 + $0xd8] sm:$0xf]
  %v70 = vld [vmem:[%s0 + $0xdc] sm:$0xf]
  %v71 = vld [vmem:[%s0 + $0xe0] sm:$0xf]
  %v72 = vld [vmem:[%s0 + $0xe4] sm:$0xf]
  %v73 = vld [vmem:[%s0 + $0xe8] sm:$0xf]
  %v74 = vld [vmem:[%s0 + $0xec] sm:$0xf]
  %v75 = vld [vmem:[%s0 + $0xf0] sm:$0xf]
  %v76 = vld [vmem:[%s0 + $0xf4] sm:$0xf]
  %v77 = vld [vmem:[%s0 + $0xf8] sm:$0xf]
  %v78 = vld [vmem:[%s0 + $0xfc] sm:$0xf]
  %v79 = vld [vmem:[%s1] sm:$0xf]
  %v80 = vld [vmem:[%s1 + $0x4] sm:$0xf]
  %v81 = vld [vmem:[%s1 + $0x8] sm:$0xf]
  %v82 = vld [vmem:[%s1 + $0xc] sm:$0xf]
  %v83 = vld [vmem:[%s1 + $0x10] sm:$0xf]
  %v84 = vld [vmem:[%s1 + $0x14] sm:$0xf]
  %v85 = vld [vmem:[%s1 + $0x18] sm:$0xf]
  %v86 = vld [vmem:[%s1 + $0x1c] sm:$0xf]
  %v87 = vld [vmem:[%s1 + $0x20] sm:$0xf]
  %v88 = vld [vmem:[%s1 + $0x24] sm:$0xf]
  %v89 = vld [vmem:[%s1 + $0x28] sm:$0xf]
  %v90 = vld [vmem:[%s1 + $0x2c] sm:$0xf]
  %v91 = vld [vmem:[%s1 + $0x30] sm:$0xf]
  %v92 = vld [vmem:[%s1 + $0x34] sm:$0xf]
  %v93 = vld [vmem:[%s1 + $0x38] sm:$0xf]
  %v94 = vld [vmem:[%s1 + $0x3c] sm:$0xf]
  %v159 = vunpack.c.l.b16 %v15
  %v160 = vunpack.c.l.b16 %v16
  %v161 = vunpack.c.l.b16 %v17
  %v162 = vunpack.c.l.b16 %v18
  %v163 = vunpack.c.l.b16 %v19
  %v164 = vunpack.c.l.b16 %v20
  %v165 = vunpack.c.l.b16 %v21
  %v166 = vunpack.c.l.b16 %v22
  %v167 = vunpack.c.l.b16 %v23
  %v168 = vunpack.c.l.b16 %v24
  %v169 = vunpack.c.l.b16 %v25
  %v170 = vunpack.c.l.b16 %v26
  %v171 = vunpack.c.l.b16 %v27
  %v172 = vunpack.c.l.b16 %v28
  %v173 = vunpack.c.l.b16 %v29
  %v174 = vunpack.c.l.b16 %v30
  %v175 = vunpack.c.l.b16 %v31
  %v176 = vunpack.c.l.b16 %v32
  %v177 = vunpack.c.l.b16 %v33
  %v178 = vunpack.c.l.b16 %v34
  %v179 = vunpack.c.l.b16 %v35
  %v180 = vunpack.c.l.b16 %v36
  %v181 = vunpack.c.l.b16 %v37
  %v182 = vunpack.c.l.b16 %v38
  %v183 = vunpack.c.l.b16 %v39
  %v184 = vunpack.c.l.b16 %v40
  %v185 = vunpack.c.l.b16 %v41
  %v186 = vunpack.c.l.b16 %v42
  %v187 = vunpack.c.l.b16 %v43
  %v188 = vunpack.c.l.b16 %v44
  %v189 = vunpack.c.l.b16 %v45
  %v190 = vunpack.c.l.b16 %v46
  %v191 = vunpack.c.l.b16 %v47
  %v192 = vunpack.c.l.b16 %v48
  %v193 = vunpack.c.l.b16 %v49
  %v194 = vunpack.c.l.b16 %v50
  %v195 = vunpack.c.l.b16 %v51
  %v196 = vunpack.c.l.b16 %v52
  %v197 = vunpack.c.l.b16 %v53
  %v198 = vunpack.c.l.b16 %v54
  %v199 = vunpack.c.l.b16 %v55
  %v200 = vunpack.c.l.b16 %v56
  %v201 = vunpack.c.l.b16 %v57
  %v202 = vunpack.c.l.b16 %v58
  %v203 = vunpack.c.l.b16 %v59
  %v204 = vunpack.c.l.b16 %v60
  %v205 = vunpack.c.l.b16 %v61
  %v206 = vunpack.c.l.b16 %v62
  %v207 = vunpack.c.l.b16 %v63
  %v208 = vunpack.c.l.b16 %v64
  %v209 = vunpack.c.l.b16 %v65
  %v210 = vunpack.c.l.b16 %v66
  %v211 = vunpack.c.l.b16 %v67
  %v212 = vunpack.c.l.b16 %v68
  %v213 = vunpack.c.l.b16 %v69
  %v214 = vunpack.c.l.b16 %v70
  %v215 = vunpack.c.l.b16 %v71
  %v216 = vunpack.c.l.b16 %v72
  %v217 = vunpack.c.l.b16 %v73
  %v218 = vunpack.c.l.b16 %v74
  %v219 = vunpack.c.l.b16 %v75
  %v220 = vunpack.c.l.b16 %v76
  %v221 = vunpack.c.l.b16 %v77
  %v222 = vunpack.c.l.b16 %v78
  %v223 = vpack.c.b16 %v160, %v159
  %v224 = vpack.c.b16 %v162, %v161
  %v225 = vpack.c.b16 %v164, %v163
  %v226 = vpack.c.b16 %v166, %v165
  %v227 = vpack.c.b16 %v168, %v167
  %v228 = vpack.c.b16 %v170, %v169
  %v229 = vpack.c.b16 %v172, %v171
  %v230 = vpack.c.b16 %v174, %v173
  %v231 = vpack.c.b16 %v176, %v175
  %v232 = vpack.c.b16 %v178, %v177
  %v233 = vpack.c.b16 %v180, %v179
  %v234 = vpack.c.b16 %v182, %v181
  %v235 = vpack.c.b16 %v184, %v183
  %v236 = vpack.c.b16 %v186, %v185
  %v237 = vpack.c.b16 %v188, %v187
  %v238 = vpack.c.b16 %v190, %v189
  %v239 = vpack.c.b16 %v192, %v191
  %v240 = vpack.c.b16 %v194, %v193
  %v241 = vpack.c.b16 %v196, %v195
  %v242 = vpack.c.b16 %v198, %v197
  %v243 = vpack.c.b16 %v200, %v199
  %v244 = vpack.c.b16 %v202, %v201
  %v245 = vpack.c.b16 %v204, %v203
  %v246 = vpack.c.b16 %v206, %v205
  %v247 = vpack.c.b16 %v208, %v207
  %v248 = vpack.c.b16 %v210, %v209
  %v249 = vpack.c.b16 %v212, %v211
  %v250 = vpack.c.b16 %v214, %v213
  %v251 = vpack.c.b16 %v216, %v215
  %v252 = vpack.c.b16 %v218, %v217
  %v253 = vpack.c.b16 %v220, %v219
  %v254 = vpack.c.b16 %v222, %v221
  %v303 = vunpack.c.l.b16 %v79
  %v304 = vunpack.c.l.b16 %v80
  %v305 = vunpack.c.l.b16 %v81
  %v306 = vunpack.c.l.b16 %v82
  %v307 = vunpack.c.l.b16 %v83
  %v308 = vunpack.c.l.b16 %v84
  %v309 = vunpack.c.l.b16 %v85
  %v310 = vunpack.c.l.b16 %v86
  %v311 = vunpack.c.l.b16 %v87
  %v312 = vunpack.c.l.b16 %v88
  %v313 = vunpack.c.l.b16 %v89
  %v314 = vunpack.c.l.b16 %v90
  %v315 = vunpack.c.l.b16 %v91
  %v316 = vunpack.c.l.b16 %v92
  %v317 = vunpack.c.l.b16 %v93
  %v318 = vunpack.c.l.b16 %v94
  %v319 = vpack.c.b16 %v304, %v303
  %v320 = vpack.c.b16 %v306, %v305
  %v321 = vpack.c.b16 %v308, %v307
  %v322 = vpack.c.b16 %v310, %v309
  %v323 = vpack.c.b16 %v312, %v311
  %v324 = vpack.c.b16 %v314, %v313
  %v325 = vpack.c.b16 %v316, %v315
  %v326 = vpack.c.b16 %v318, %v317
  %335 = vmatprep.subr.bf16.mxu0 0
  %336 = vmatpush1.bf16.msra.mxu0 %v326
  %337 = vmatprep.subr.bf16.mxu0 0
  %338 = vmatpush1.bf16.msra.mxu0 %v325
  %339 = vmatprep.subr.bf16.mxu0 0
  %340 = vmatpush1.bf16.msra.mxu0 %v324
  %341 = vmatprep.subr.bf16.mxu0 0
  %342 = vmatpush1.bf16.msra.mxu0 %v323
  %343 = vmatprep.subr.bf16.mxu0 0
  %344 = vmatpush1.bf16.msra.mxu0 %v322
  %345 = vmatprep.subr.bf16.mxu0 0
  %346 = vmatpush1.bf16.msra.mxu0 %v321
  %347 = vmatprep.subr.bf16.mxu0 0
  %348 = vmatpush1.bf16.msra.mxu0 %v320
  %349 = vmatprep.subr.bf16.mxu0 0
  %350 = vmatpush1.bf16.msra.mxu0 %v319
  %351 = vmatprep.subr.bf16.mxu0 0
  %352 = vmatpush2.bf16.msra.mxu0 0
  %353 = vmatprep.subr.bf16.mxu0 0
  %354 = vmatpush2.bf16.msra.mxu0 0
  %355 = vmatprep.subr.bf16.mxu0 0
  %356 = vmatpush2.bf16.msra.mxu0 0
  %357 = vmatprep.subr.bf16.mxu0 0
  %358 = vmatpush2.bf16.msra.mxu0 0
  %359 = vmatprep.subr.bf16.mxu0 0
  %360 = vmatpush2.bf16.msra.mxu0 0
  %361 = vmatprep.subr.bf16.mxu0 0
  %362 = vmatpush2.bf16.msra.mxu0 0
  %363 = vmatprep.subr.bf16.mxu0 0
  %364 = vmatpush2.bf16.msra.mxu0 0
  %365 = vmatprep.subr.bf16.mxu0 0
  %366 = vmatpush2.bf16.msra.mxu0 0
  %367 = vmatprep.mubr.bf16.mxu0 0
  %368 = vmatmul.mubr.bf16.gmra.mxu0 %v223
  %v369 = vpop.f32.mrf.mxu0
  %v370 = vadd.f32 0.0, %v369
  %v371 = vpop.f32.mrf.mxu0
  %v372 = vpop.f32.mrf.mxu0
  %v373 = vadd.f32 0.0, %v372
  %v374 = vpop.f32.mrf.mxu0
  %375 = vmatprep.mubr.bf16.mxu0 0
  %376 = vmatmul.mubr.bf16.gmra.mxu0 %v224
  %v377 = vpop.f32.mrf.mxu0
  %v378 = vadd.f32 0.0, %v377
  %v379 = vpop.f32.mrf.mxu0
  %v380 = vpop.f32.mrf.mxu0
  %v381 = vadd.f32 0.0, %v380
  %v382 = vpop.f32.mrf.mxu0
  %383 = vmatprep.mubr.bf16.mxu0 0
  %384 = vmatmul.mubr.bf16.gmra.mxu0 %v225
  %v385 = vpop.f32.mrf.mxu0
  %v386 = vadd.f32 0.0, %v385
  %v387 = vpop.f32.mrf.mxu0
  %v388 = vpop.f32.mrf.mxu0
  %v389 = vadd.f32 0.0, %v388
  %v390 = vpop.f32.mrf.mxu0
  %391 = vmatprep.mubr.bf16.mxu0 0
  %392 = vmatmul.mubr.bf16.gmra.mxu0 %v226
  %v393 = vpop.f32.mrf.mxu0
  %v394 = vadd.f32 0.0, %v393
  %v395 = vpop.f32.mrf.mxu0
  %v396 = vpop.f32.mrf.mxu0
  %v397 = vadd.f32 0.0, %v396
  %v398 = vpop.f32.mrf.mxu0
  %399 = vmatprep.mubr.bf16.mxu0 0
  %400 = vmatmul.mubr.bf16.gmra.mxu0 %v227
  %v401 = vpop.f32.mrf.mxu0
  %v402 = vadd.f32 0.0, %v401
  %v403 = vpop.f32.mrf.mxu0
  %v404 = vpop.f32.mrf.mxu0
  %v405 = vadd.f32 0.0, %v404
  %v406 = vpop.f32.mrf.mxu0
  %407 = vmatprep.mubr.bf16.mxu0 0
  %408 = vmatmul.mubr.bf16.gmra.mxu0 %v228
  %v409 = vpop.f32.mrf.mxu0
  %v410 = vadd.f32 0.0, %v409
  %v411 = vpop.f32.mrf.mxu0
  %v412 = vpop.f32.mrf.mxu0
  %v413 = vadd.f32 0.0, %v412
  %v414 = vpop.f32.mrf.mxu0
  %415 = vmatprep.mubr.bf16.mxu0 0
  %416 = vmatmul.mubr.bf16.gmra.mxu0 %v229
  %v417 = vpop.f32.mrf.mxu0
  %v418 = vadd.f32 0.0, %v417
  %v419 = vpop.f32.mrf.mxu0
  %v420 = vpop.f32.mrf.mxu0
  %v421 = vadd.f32 0.0, %v420
  %v422 = vpop.f32.mrf.mxu0
  %423 = vmatprep.mubr.bf16.mxu0 0
  %424 = vmatmul.mubr.bf16.gmra.mxu0 %v230
  %v425 = vpop.f32.mrf.mxu0
  %v426 = vadd.f32 0.0, %v425
  %v427 = vpop.f32.mrf.mxu0
  %v428 = vpop.f32.mrf.mxu0
  %v429 = vadd.f32 0.0, %v428
  %v430 = vpop.f32.mrf.mxu0
  %431 = vmatprep.mubr.bf16.mxu0 0
  %432 = vmatmul.mubr.bf16.gmra.mxu0 %v231
  %v433 = vpop.f32.mrf.mxu0
  %v434 = vadd.f32 0.0, %v433
  %v435 = vpop.f32.mrf.mxu0
  %v436 = vpop.f32.mrf.mxu0
  %v437 = vadd.f32 0.0, %v436
  %v438 = vpop.f32.mrf.mxu0
  %439 = vmatprep.mubr.bf16.mxu0 0
  %440 = vmatmul.mubr.bf16.gmra.mxu0 %v232
  %v441 = vpop.f32.mrf.mxu0
  %v442 = vadd.f32 0.0, %v441
  %v443 = vpop.f32.mrf.mxu0
  %v444 = vpop.f32.mrf.mxu0
  %v445 = vadd.f32 0.0, %v444
  %v446 = vpop.f32.mrf.mxu0
  %447 = vmatprep.mubr.bf16.mxu0 0
  %448 = vmatmul.mubr.bf16.gmra.mxu0 %v233
  %v449 = vpop.f32.mrf.mxu0
  %v450 = vadd.f32 0.0, %v449
  %v451 = vpop.f32.mrf.mxu0
  %v452 = vpop.f32.mrf.mxu0
  %v453 = vadd.f32 0.0, %v452
  %v454 = vpop.f32.mrf.mxu0
  %455 = vmatprep.mubr.bf16.mxu0 0
  %456 = vmatmul.mubr.bf16.gmra.mxu0 %v234
  %v457 = vpop.f32.mrf.mxu0
  %v458 = vadd.f32 0.0, %v457
  %v459 = vpop.f32.mrf.mxu0
  %v460 = vpop.f32.mrf.mxu0
  %v461 = vadd.f32 0.0, %v460
  %v462 = vpop.f32.mrf.mxu0
  %463 = vmatprep.mubr.bf16.mxu0 0
  %464 = vmatmul.mubr.bf16.gmra.mxu0 %v235
  %v465 = vpop.f32.mrf.mxu0
  %v466 = vadd.f32 0.0, %v465
  %v467 = vpop.f32.mrf.mxu0
  %v468 = vpop.f32.mrf.mxu0
  %v469 = vadd.f32 0.0, %v468
  %v470 = vpop.f32.mrf.mxu0
  %471 = vmatprep.mubr.bf16.mxu0 0
  %472 = vmatmul.mubr.bf16.gmra.mxu0 %v236
  %v473 = vpop.f32.mrf.mxu0
  %v474 = vadd.f32 0.0, %v473
  %v475 = vpop.f32.mrf.mxu0
  %v476 = vpop.f32.mrf.mxu0
  %v477 = vadd.f32 0.0, %v476
  %v478 = vpop.f32.mrf.mxu0
  %479 = vmatprep.mubr.bf16.mxu0 0
  %480 = vmatmul.mubr.bf16.gmra.mxu0 %v237
  %v481 = vpop.f32.mrf.mxu0
  %v482 = vadd.f32 0.0, %v481
  %v483 = vpop.f32.mrf.mxu0
  %v484 = vpop.f32.mrf.mxu0
  %v485 = vadd.f32 0.0, %v484
  %v486 = vpop.f32.mrf.mxu0
  %487 = vmatprep.mubr.bf16.mxu0 0
  %488 = vmatmul.mubr.bf16.gmra.mxu0 %v238
  %v489 = vpop.f32.mrf.mxu0
  %v490 = vadd.f32 0.0, %v489
  %v491 = vpop.f32.mrf.mxu0
  %v492 = vpop.f32.mrf.mxu0
  %v493 = vadd.f32 0.0, %v492
  %v494 = vpop.f32.mrf.mxu0
  %495 = vmatprep.mubr.bf16.mxu0 0
  %496 = vmatmul.mubr.bf16.gmra.mxu0 %v239
  %v497 = vpop.f32.mrf.mxu0
  %v498 = vadd.f32 0.0, %v497
  %v499 = vpop.f32.mrf.mxu0
  %v500 = vpop.f32.mrf.mxu0
  %v501 = vadd.f32 0.0, %v500
  %v502 = vpop.f32.mrf.mxu0
  %503 = vmatprep.mubr.bf16.mxu0 0
  %504 = vmatmul.mubr.bf16.gmra.mxu0 %v240
  %v505 = vpop.f32.mrf.mxu0
  %v506 = vadd.f32 0.0, %v505
  %v507 = vpop.f32.mrf.mxu0
  %v508 = vpop.f32.mrf.mxu0
  %v509 = vadd.f32 0.0, %v508
  %v510 = vpop.f32.mrf.mxu0
  %511 = vmatprep.mubr.bf16.mxu0 0
  %512 = vmatmul.mubr.bf16.gmra.mxu0 %v241
  %v513 = vpop.f32.mrf.mxu0
  %v514 = vadd.f32 0.0, %v513
  %v515 = vpop.f32.mrf.mxu0
  %v516 = vpop.f32.mrf.mxu0
  %v517 = vadd.f32 0.0, %v516
  %v518 = vpop.f32.mrf.mxu0
  %519 = vmatprep.mubr.bf16.mxu0 0
  %520 = vmatmul.mubr.bf16.gmra.mxu0 %v242
  %v521 = vpop.f32.mrf.mxu0
  %v522 = vadd.f32 0.0, %v521
  %v523 = vpop.f32.mrf.mxu0
  %v524 = vpop.f32.mrf.mxu0
  %v525 = vadd.f32 0.0, %v524
  %v526 = vpop.f32.mrf.mxu0
  %527 = vmatprep.mubr.bf16.mxu0 0
  %528 = vmatmul.mubr.bf16.gmra.mxu0 %v243
  %v529 = vpop.f32.mrf.mxu0
  %v530 = vadd.f32 0.0, %v529
  %v531 = vpop.f32.mrf.mxu0
  %v532 = vpop.f32.mrf.mxu0
  %v533 = vadd.f32 0.0, %v532
  %v534 = vpop.f32.mrf.mxu0
  %535 = vmatprep.mubr.bf16.mxu0 0
  %536 = vmatmul.mubr.bf16.gmra.mxu0 %v244
  %v537 = vpop.f32.mrf.mxu0
  %v538 = vadd.f32 0.0, %v537
  %v539 = vpop.f32.mrf.mxu0
  %v540 = vpop.f32.mrf.mxu0
  %v541 = vadd.f32 0.0, %v540
  %v542 = vpop.f32.mrf.mxu0
  %543 = vmatprep.mubr.bf16.mxu0 0
  %544 = vmatmul.mubr.bf16.gmra.mxu0 %v245
  %v545 = vpop.f32.mrf.mxu0
  %v546 = vadd.f32 0.0, %v545
  %v547 = vpop.f32.mrf.mxu0
  %v548 = vpop.f32.mrf.mxu0
  %v549 = vadd.f32 0.0, %v548
  %v550 = vpop.f32.mrf.mxu0
  %551 = vmatprep.mubr.bf16.mxu0 0
  %552 = vmatmul.mubr.bf16.gmra.mxu0 %v246
  %v553 = vpop.f32.mrf.mxu0
  %v554 = vadd.f32 0.0, %v553
  %v555 = vpop.f32.mrf.mxu0
  %v556 = vpop.f32.mrf.mxu0
  %v557 = vadd.f32 0.0, %v556
  %v558 = vpop.f32.mrf.mxu0
  %559 = vmatprep.mubr.bf16.mxu0 0
  %560 = vmatmul.mubr.bf16.gmra.mxu0 %v247
  %v561 = vpop.f32.mrf.mxu0
  %v562 = vadd.f32 0.0, %v561
  %v563 = vpop.f32.mrf.mxu0
  %v564 = vpop.f32.mrf.mxu0
  %v565 = vadd.f32 0.0, %v564
  %v566 = vpop.f32.mrf.mxu0
  %567 = vmatprep.mubr.bf16.mxu0 0
  %568 = vmatmul.mubr.bf16.gmra.mxu0 %v248
  %v569 = vpop.f32.mrf.mxu0
  %v570 = vadd.f32 0.0, %v569
  %v571 = vpop.f32.mrf.mxu0
  %v572 = vpop.f32.mrf.mxu0
  %v573 = vadd.f32 0.0, %v572
  %v574 = vpop.f32.mrf.mxu0
  %575 = vmatprep.mubr.bf16.mxu0 0
  %576 = vmatmul.mubr.bf16.gmra.mxu0 %v249
  %v577 = vpop.f32.mrf.mxu0
  %v578 = vadd.f32 0.0, %v577
  %v579 = vpop.f32.mrf.mxu0
  %v580 = vpop.f32.mrf.mxu0
  %v581 = vadd.f32 0.0, %v580
  %v582 = vpop.f32.mrf.mxu0
  %583 = vmatprep.mubr.bf16.mxu0 0
  %584 = vmatmul.mubr.bf16.gmra.mxu0 %v250
  %v585 = vpop.f32.mrf.mxu0
  %v586 = vadd.f32 0.0, %v585
  %v587 = vpop.f32.mrf.mxu0
  %v588 = vpop.f32.mrf.mxu0
  %v589 = vadd.f32 0.0, %v588
  %v590 = vpop.f32.mrf.mxu0
  %591 = vmatprep.mubr.bf16.mxu0 0
  %592 = vmatmul.mubr.bf16.gmra.mxu0 %v251
  %v593 = vpop.f32.mrf.mxu0
  %v594 = vadd.f32 0.0, %v593
  %v595 = vpop.f32.mrf.mxu0
  %v596 = vpop.f32.mrf.mxu0
  %v597 = vadd.f32 0.0, %v596
  %v598 = vpop.f32.mrf.mxu0
  %599 = vmatprep.mubr.bf16.mxu0 0
  %600 = vmatmul.mubr.bf16.gmra.mxu0 %v252
  %v601 = vpop.f32.mrf.mxu0
  %v602 = vadd.f32 0.0, %v601
  %v603 = vpop.f32.mrf.mxu0
  %v604 = vpop.f32.mrf.mxu0
  %v605 = vadd.f32 0.0, %v604
  %v606 = vpop.f32.mrf.mxu0
  %607 = vmatprep.mubr.bf16.mxu0 0
  %608 = vmatmul.mubr.bf16.gmra.mxu0 %v253
  %v609 = vpop.f32.mrf.mxu0
  %v610 = vadd.f32 0.0, %v609
  %v611 = vpop.f32.mrf.mxu0
  %v612 = vpop.f32.mrf.mxu0
  %v613 = vadd.f32 0.0, %v612
  %v614 = vpop.f32.mrf.mxu0
  %615 = vmatprep.mubr.bf16.mxu0 0
  %616 = vmatmul.mubr.bf16.gmra.mxu0 %v254
  %v617 = vpop.f32.mrf.mxu0
  %v618 = vadd.f32 0.0, %v617
  %v619 = vpop.f32.mrf.mxu0
  %v620 = vpop.f32.mrf.mxu0
  %v621 = vadd.f32 0.0, %v620
  %v622 = vpop.f32.mrf.mxu0
  %623 = vdwg.mxu0
  %v624 = vpack.c.bf16 %v373, %v370
  %v625 = vpack.c.bf16 %v381, %v378
  %v626 = vpack.c.bf16 %v389, %v386
  %v627 = vpack.c.bf16 %v397, %v394
  %v628 = vpack.c.bf16 %v405, %v402
  %v629 = vpack.c.bf16 %v413, %v410
  %v630 = vpack.c.bf16 %v421, %v418
  %v631 = vpack.c.bf16 %v429, %v426
  %v632 = vpack.c.bf16 %v437, %v434
  %v633 = vpack.c.bf16 %v445, %v442
  %v634 = vpack.c.bf16 %v453, %v450
  %v635 = vpack.c.bf16 %v461, %v458
  %v636 = vpack.c.bf16 %v469, %v466
  %v637 = vpack.c.bf16 %v477, %v474
  %v638 = vpack.c.bf16 %v485, %v482
  %v639 = vpack.c.bf16 %v493, %v490
  %v640 = vpack.c.bf16 %v501, %v498
  %v641 = vpack.c.bf16 %v509, %v506
  %v642 = vpack.c.bf16 %v517, %v514
  %v643 = vpack.c.bf16 %v525, %v522
  %v644 = vpack.c.bf16 %v533, %v530
  %v645 = vpack.c.bf16 %v541, %v538
  %v646 = vpack.c.bf16 %v549, %v546
  %v647 = vpack.c.bf16 %v557, %v554
  %v648 = vpack.c.bf16 %v565, %v562
  %v649 = vpack.c.bf16 %v573, %v570
  %v650 = vpack.c.bf16 %v581, %v578
  %v651 = vpack.c.bf16 %v589, %v586
  %v652 = vpack.c.bf16 %v597, %v594
  %v653 = vpack.c.bf16 %v605, %v602
  %v654 = vpack.c.bf16 %v613, %v610
  %v655 = vpack.c.bf16 %v621, %v618
  %v688 = vunpack.c.l.b16 %v624
  %v689 = vunpack.c.h.b16 %v624
  %v690 = vunpack.c.l.b16 %v625
  %v691 = vunpack.c.h.b16 %v625
  %v692 = vunpack.c.l.b16 %v626
  %v693 = vunpack.c.h.b16 %v626
  %v694 = vunpack.c.l.b16 %v627
  %v695 = vunpack.c.h.b16 %v627
  %v696 = vunpack.c.l.b16 %v628
  %v697 = vunpack.c.h.b16 %v628
  %v698 = vunpack.c.l.b16 %v629
  %v699 = vunpack.c.h.b16 %v629
  %v700 = vunpack.c.l.b16 %v630
  %v701 = vunpack.c.h.b16 %v630
  %v702 = vunpack.c.l.b16 %v631
  %v703 = vunpack.c.h.b16 %v631
  %v704 = vunpack.c.l.b16 %v632
  %v705 = vunpack.c.h.b16 %v632
  %v706 = vunpack.c.l.b16 %v633
  %v707 = vunpack.c.h.b16 %v633
  %v708 = vunpack.c.l.b16 %v634
  %v709 = vunpack.c.h.b16 %v634
  %v710 = vunpack.c.l.b16 %v635
  %v711 = vunpack.c.h.b16 %v635
  %v712 = vunpack.c.l.b16 %v636
  %v713 = vunpack.c.h.b16 %v636
  %v714 = vunpack.c.l.b16 %v637
  %v715 = vunpack.c.h.b16 %v637
  %v716 = vunpack.c.l.b16 %v638
  %v717 = vunpack.c.h.b16 %v638
  %v718 = vunpack.c.l.b16 %v639
  %v719 = vunpack.c.h.b16 %v639
  %v720 = vunpack.c.l.b16 %v640
  %v721 = vunpack.c.h.b16 %v640
  %v722 = vunpack.c.l.b16 %v641
  %v723 = vunpack.c.h.b16 %v641
  %v724 = vunpack.c.l.b16 %v642
  %v725 = vunpack.c.h.b16 %v642
  %v726 = vunpack.c.l.b16 %v643
  %v727 = vunpack.c.h.b16 %v643
  %v728 = vunpack.c.l.b16 %v644
  %v729 = vunpack.c.h.b16 %v644
  %v730 = vunpack.c.l.b16 %v645
  %v731 = vunpack.c.h.b16 %v645
  %v732 = vunpack.c.l.b16 %v646
  %v733 = vunpack.c.h.b16 %v646
  %v734 = vunpack.c.l.b16 %v647
  %v735 = vunpack.c.h.b16 %v647
  %v736 = vunpack.c.l.b16 %v648
  %v737 = vunpack.c.h.b16 %v648
  %v738 = vunpack.c.l.b16 %v649
  %v739 = vunpack.c.h.b16 %v649
  %v740 = vunpack.c.l.b16 %v650
  %v741 = vunpack.c.h.b16 %v650
  %v742 = vunpack.c.l.b16 %v651
  %v743 = vunpack.c.h.b16 %v651
  %v744 = vunpack.c.l.b16 %v652
  %v745 = vunpack.c.h.b16 %v652
  %v746 = vunpack.c.l.b16 %v653
  %v747 = vunpack.c.h.b16 %v653
  %v748 = vunpack.c.l.b16 %v654
  %v749 = vunpack.c.h.b16 %v654
  %v750 = vunpack.c.l.b16 %v655
  %v751 = vunpack.c.h.b16 %v655
  %v752 = vpack.c.b16 %v688, %v688
  %v753 = vpack.c.b16 %v689, %v689
  %v754 = vpack.c.b16 %v690, %v690
  %v755 = vpack.c.b16 %v691, %v691
  %v756 = vpack.c.b16 %v692, %v692
  %v757 = vpack.c.b16 %v693, %v693
  %v758 = vpack.c.b16 %v694, %v694
  %v759 = vpack.c.b16 %v695, %v695
  %v760 = vpack.c.b16 %v696, %v696
  %v761 = vpack.c.b16 %v697, %v697
  %v762 = vpack.c.b16 %v698, %v698
  %v763 = vpack.c.b16 %v699, %v699
  %v764 = vpack.c.b16 %v700, %v700
  %v765 = vpack.c.b16 %v701, %v701
  %v766 = vpack.c.b16 %v702, %v702
  %v767 = vpack.c.b16 %v703, %v703
  %v768 = vpack.c.b16 %v704, %v704
  %v769 = vpack.c.b16 %v705, %v705
  %v770 = vpack.c.b16 %v706, %v706
  %v771 = vpack.c.b16 %v707, %v707
  %v772 = vpack.c.b16 %v708, %v708
  %v773 = vpack.c.b16 %v709, %v709
  %v774 = vpack.c.b16 %v710, %v710
  %v775 = vpack.c.b16 %v711, %v711
  %v776 = vpack.c.b16 %v712, %v712
  %v777 = vpack.c.b16 %v713, %v713
  %v778 = vpack.c.b16 %v714, %v714
  %v779 = vpack.c.b16 %v715, %v715
  %v780 = vpack.c.b16 %v716, %v716
  %v781 = vpack.c.b16 %v717, %v717
  %v782 = vpack.c.b16 %v718, %v718
  %v783 = vpack.c.b16 %v719, %v719
  %v784 = vpack.c.b16 %v720, %v720
  %v785 = vpack.c.b16 %v721, %v721
  %v786 = vpack.c.b16 %v722, %v722
  %v787 = vpack.c.b16 %v723, %v723
  %v788 = vpack.c.b16 %v724, %v724
  %v789 = vpack.c.b16 %v725, %v725
  %v790 = vpack.c.b16 %v726, %v726
  %v791 = vpack.c.b16 %v727, %v727
  %v792 = vpack.c.b16 %v728, %v728
  %v793 = vpack.c.b16 %v729, %v729
  %v794 = vpack.c.b16 %v730, %v730
  %v795 = vpack.c.b16 %v731, %v731
  %v796 = vpack.c.b16 %v732, %v732
  %v797 = vpack.c.b16 %v733, %v733
  %v798 = vpack.c.b16 %v734, %v734
  %v799 = vpack.c.b16 %v735, %v735
  %v800 = vpack.c.b16 %v736, %v736
  %v801 = vpack.c.b16 %v737, %v737
  %v802 = vpack.c.b16 %v738, %v738
  %v803 = vpack.c.b16 %v739, %v739
  %v804 = vpack.c.b16 %v740, %v740
  %v805 = vpack.c.b16 %v741, %v741
  %v806 = vpack.c.b16 %v742, %v742
  %v807 = vpack.c.b16 %v743, %v743
  %v808 = vpack.c.b16 %v744, %v744
  %v809 = vpack.c.b16 %v745, %v745
  %v810 = vpack.c.b16 %v746, %v746
  %v811 = vpack.c.b16 %v747, %v747
  %v812 = vpack.c.b16 %v748, %v748
  %v813 = vpack.c.b16 %v749, %v749
  %v814 = vpack.c.b16 %v750, %v750
  %v815 = vpack.c.b16 %v751, %v751
  %880 = vst [vmem:[%s2] sm:$0xf] %v752
  %881 = vst [vmem:[%s2 + $0x4] sm:$0xf] %v753
  %882 = vst [vmem:[%s2 + $0x8] sm:$0xf] %v754
  %883 = vst [vmem:[%s2 + $0xc] sm:$0xf] %v755
  %884 = vst [vmem:[%s2 + $0x10] sm:$0xf] %v756
  %885 = vst [vmem:[%s2 + $0x14] sm:$0xf] %v757
  %886 = vst [vmem:[%s2 + $0x18] sm:$0xf] %v758
  %887 = vst [vmem:[%s2 + $0x1c] sm:$0xf] %v759
  %888 = vst [vmem:[%s2 + $0x20] sm:$0xf] %v760
  %889 = vst [vmem:[%s2 + $0x24] sm:$0xf] %v761
  %890 = vst [vmem:[%s2 + $0x28] sm:$0xf] %v762
  %891 = vst [vmem:[%s2 + $0x2c] sm:$0xf] %v763
  %892 = vst [vmem:[%s2 + $0x30] sm:$0xf] %v764
  %893 = vst [vmem:[%s2 + $0x34] sm:$0xf] %v765
  %894 = vst [vmem:[%s2 + $0x38] sm:$0xf] %v766
  %895 = vst [vmem:[%s2 + $0x3c] sm:$0xf] %v767
  %896 = vst [vmem:[%s2 + $0x40] sm:$0xf] %v768
  %897 = vst [vmem:[%s2 + $0x44] sm:$0xf] %v769
  %898 = vst [vmem:[%s2 + $0x48] sm:$0xf] %v770
  %899 = vst [vmem:[%s2 + $0x4c] sm:$0xf] %v771
  %900 = vst [vmem:[%s2 + $0x50] sm:$0xf] %v772
  %901 = vst [vmem:[%s2 + $0x54] sm:$0xf] %v773
  %902 = vst [vmem:[%s2 + $0x58] sm:$0xf] %v774
  %903 = vst [vmem:[%s2 + $0x5c] sm:$0xf] %v775
  %904 = vst [vmem:[%s2 + $0x60] sm:$0xf] %v776
  %905 = vst [vmem:[%s2 + $0x64] sm:$0xf] %v777
  %906 = vst [vmem:[%s2 + $0x68] sm:$0xf] %v778
  %907 = vst [vmem:[%s2 + $0x6c] sm:$0xf] %v779
  %908 = vst [vmem:[%s2 + $0x70] sm:$0xf] %v780
  %909 = vst [vmem:[%s2 + $0x74] sm:$0xf] %v781
  %910 = vst [vmem:[%s2 + $0x78] sm:$0xf] %v782
  %911 = vst [vmem:[%s2 + $0x7c] sm:$0xf] %v783
  %912 = vst [vmem:[%s2 + $0x80] sm:$0xf] %v784
  %913 = vst [vmem:[%s2 + $0x84] sm:$0xf] %v785
  %914 = vst [vmem:[%s2 + $0x88] sm:$0xf] %v786
  %915 = vst [vmem:[%s2 + $0x8c] sm:$0xf] %v787
  %916 = vst [vmem:[%s2 + $0x90] sm:$0xf] %v788
  %917 = vst [vmem:[%s2 + $0x94] sm:$0xf] %v789
  %918 = vst [vmem:[%s2 + $0x98] sm:$0xf] %v790
  %919 = vst [vmem:[%s2 + $0x9c] sm:$0xf] %v791
  %920 = vst [vmem:[%s2 + $0xa0] sm:$0xf] %v792
  %921 = vst [vmem:[%s2 + $0xa4] sm:$0xf] %v793
  %922 = vst [vmem:[%s2 + $0xa8] sm:$0xf] %v794
  %923 = vst [vmem:[%s2 + $0xac] sm:$0xf] %v795
  %924 = vst [vmem:[%s2 + $0xb0] sm:$0xf] %v796
  %925 = vst [vmem:[%s2 + $0xb4] sm:$0xf] %v797
  %926 = vst [vmem:[%s2 + $0xb8] sm:$0xf] %v798
  %927 = vst [vmem:[%s2 + $0xbc] sm:$0xf] %v799
  %928 = vst [vmem:[%s2 + $0xc0] sm:$0xf] %v800
  %929 = vst [vmem:[%s2 + $0xc4] sm:$0xf] %v801
  %930 = vst [vmem:[%s2 + $0xc8] sm:$0xf] %v802
  %931 = vst [vmem:[%s2 + $0xcc] sm:$0xf] %v803
  %932 = vst [vmem:[%s2 + $0xd0] sm:$0xf] %v804
  %933 = vst [vmem:[%s2 + $0xd4] sm:$0xf] %v805
  %934 = vst [vmem:[%s2 + $0xd8] sm:$0xf] %v806
  %935 = vst [vmem:[%s2 + $0xdc] sm:$0xf] %v807
  %936 = vst [vmem:[%s2 + $0xe0] sm:$0xf] %v808
  %937 = vst [vmem:[%s2 + $0xe4] sm:$0xf] %v809
  %938 = vst [vmem:[%s2 + $0xe8] sm:$0xf] %v810
  %939 = vst [vmem:[%s2 + $0xec] sm:$0xf] %v811
  %940 = vst [vmem:[%s2 + $0xf0] sm:$0xf] %v812
  %941 = vst [vmem:[%s2 + $0xf4] sm:$0xf] %v813
  %942 = vst [vmem:[%s2 + $0xf8] sm:$0xf] %v814
  %943 = vst [vmem:[%s2 + $0xfc] sm:$0xf] %v815
  %v944 = vadd.f32 %v370, %v373
  %v945 = vadd.f32 %v944, %v378
  %v946 = vadd.f32 %v945, %v381
  %v947 = vadd.f32 %v946, %v386
  %v948 = vadd.f32 %v947, %v389
  %v949 = vadd.f32 %v948, %v394
  %v950 = vadd.f32 %v949, %v397
  %v951 = vadd.f32 %v950, %v402
  %v952 = vadd.f32 %v951, %v405
  %v953 = vadd.f32 %v952, %v410
  %v954 = vadd.f32 %v953, %v413
  %v955 = vadd.f32 %v954, %v418
  %v956 = vadd.f32 %v955, %v421
  %v957 = vadd.f32 %v956, %v426
  %v958 = vadd.f32 %v957, %v429
  %v959 = vadd.f32 %v958, %v434
  %v960 = vadd.f32 %v959, %v437
  %v961 = vadd.f32 %v960, %v442
  %v962 = vadd.f32 %v961, %v445
  %v963 = vadd.f32 %v962, %v450
  %v964 = vadd.f32 %v963, %v453
  %v965 = vadd.f32 %v964, %v458
  %v966 = vadd.f32 %v965, %v461
  %v967 = vadd.f32 %v966, %v466
  %v968 = vadd.f32 %v967, %v469
  %v969 = vadd.f32 %v968, %v474
  %v970 = vadd.f32 %v969, %v477
  %v971 = vadd.f32 %v970, %v482
  %v972 = vadd.f32 %v971, %v485
  %v973 = vadd.f32 %v972, %v490
  %v974 = vadd.f32 %v973, %v493
  %v975 = vadd.f32 %v974, %v498
  %v976 = vadd.f32 %v975, %v501
  %v977 = vadd.f32 %v976, %v506
  %v978 = vadd.f32 %v977, %v509
  %v979 = vadd.f32 %v978, %v514
  %v980 = vadd.f32 %v979, %v517
  %v981 = vadd.f32 %v980, %v522
  %v982 = vadd.f32 %v981, %v525
  %v983 = vadd.f32 %v982, %v530
  %v984 = vadd.f32 %v983, %v533
  %v985 = vadd.f32 %v984, %v538
  %v986 = vadd.f32 %v985, %v541
  %v987 = vadd.f32 %v986, %v546
  %v988 = vadd.f32 %v987, %v549
  %v989 = vadd.f32 %v988, %v554
  %v990 = vadd.f32 %v989, %v557
  %v991 = vadd.f32 %v990, %v562
  %v992 = vadd.f32 %v991, %v565
  %v993 = vadd.f32 %v992, %v570
  %v994 = vadd.f32 %v993, %v573
  %v995 = vadd.f32 %v994, %v578
  %v996 = vadd.f32 %v995, %v581
  %v997 = vadd.f32 %v996, %v586
  %v998 = vadd.f32 %v997, %v589
  %v999 = vadd.f32 %v998, %v594
  %v1000 = vadd.f32 %v999, %v597
  %v1001 = vadd.f32 %v1000, %v602
  %v1002 = vadd.f32 %v1001, %v605
  %v1003 = vadd.f32 %v1002, %v610
  %v1004 = vadd.f32 %v1003, %v613
  %v1005 = vadd.f32 %v1004, %v618
  %v1006 = vadd.f32 %v1005, %v621
  %v1007 = vrot.slane %v1006, 4
  %v1008 = vadd.f32 %v1006, %v1007
  %v1009 = vrot.slane %v1008, 2
  %v1010 = vadd.f32 %v1008, %v1009
  %v1011 = vrot.slane %v1010, 1
  %v1012 = vadd.f32 %v1010, %v1011
  %1013 = vst [vmem:[%s3] sm:$0x1] %v1012
  %v1014 = vmul.f32 %v370, %v370
  %v1015 = vmul.f32 %v373, %v373
  %v1016 = vmul.f32 %v378, %v378
  %v1017 = vmul.f32 %v381, %v381
  %v1018 = vmul.f32 %v386, %v386
  %v1019 = vmul.f32 %v389, %v389
  %v1020 = vmul.f32 %v394, %v394
  %v1021 = vmul.f32 %v397, %v397
  %v1022 = vmul.f32 %v402, %v402
  %v1023 = vmul.f32 %v405, %v405
  %v1024 = vmul.f32 %v410, %v410
  %v1025 = vmul.f32 %v413, %v413
  %v1026 = vmul.f32 %v418, %v418
  %v1027 = vmul.f32 %v421, %v421
  %v1028 = vmul.f32 %v426, %v426
  %v1029 = vmul.f32 %v429, %v429
  %v1030 = vmul.f32 %v434, %v434
  %v1031 = vmul.f32 %v437, %v437
  %v1032 = vmul.f32 %v442, %v442
  %v1033 = vmul.f32 %v445, %v445
  %v1034 = vmul.f32 %v450, %v450
  %v1035 = vmul.f32 %v453, %v453
  %v1036 = vmul.f32 %v458, %v458
  %v1037 = vmul.f32 %v461, %v461
  %v1038 = vmul.f32 %v466, %v466
  %v1039 = vmul.f32 %v469, %v469
  %v1040 = vmul.f32 %v474, %v474
  %v1041 = vmul.f32 %v477, %v477
  %v1042 = vmul.f32 %v482, %v482
  %v1043 = vmul.f32 %v485, %v485
  %v1044 = vmul.f32 %v490, %v490
  %v1045 = vmul.f32 %v493, %v493
  %v1046 = vmul.f32 %v498, %v498
  %v1047 = vmul.f32 %v501, %v501
  %v1048 = vmul.f32 %v506, %v506
  %v1049 = vmul.f32 %v509, %v509
  %v1050 = vmul.f32 %v514, %v514
  %v1051 = vmul.f32 %v517, %v517
  %v1052 = vmul.f32 %v522, %v522
  %v1053 = vmul.f32 %v525, %v525
  %v1054 = vmul.f32 %v530, %v530
  %v1055 = vmul.f32 %v533, %v533
  %v1056 = vmul.f32 %v538, %v538
  %v1057 = vmul.f32 %v541, %v541
  %v1058 = vmul.f32 %v546, %v546
  %v1059 = vmul.f32 %v549, %v549
  %v1060 = vmul.f32 %v554, %v554
  %v1061 = vmul.f32 %v557, %v557
  %v1062 = vmul.f32 %v562, %v562
  %v1063 = vmul.f32 %v565, %v565
  %v1064 = vmul.f32 %v570, %v570
  %v1065 = vmul.f32 %v573, %v573
  %v1066 = vmul.f32 %v578, %v578
  %v1067 = vmul.f32 %v581, %v581
  %v1068 = vmul.f32 %v586, %v586
  %v1069 = vmul.f32 %v589, %v589
  %v1070 = vmul.f32 %v594, %v594
  %v1071 = vmul.f32 %v597, %v597
  %v1072 = vmul.f32 %v602, %v602
  %v1073 = vmul.f32 %v605, %v605
  %v1074 = vmul.f32 %v610, %v610
  %v1075 = vmul.f32 %v613, %v613
  %v1076 = vmul.f32 %v618, %v618
  %v1077 = vmul.f32 %v621, %v621
  %v1078 = vadd.f32 %v1014, %v1015
  %v1079 = vadd.f32 %v1078, %v1016
  %v1080 = vadd.f32 %v1079, %v1017
  %v1081 = vadd.f32 %v1080, %v1018
  %v1082 = vadd.f32 %v1081, %v1019
  %v1083 = vadd.f32 %v1082, %v1020
  %v1084 = vadd.f32 %v1083, %v1021
  %v1085 = vadd.f32 %v1084, %v1022
  %v1086 = vadd.f32 %v1085, %v1023
  %v1087 = vadd.f32 %v1086, %v1024
  %v1088 = vadd.f32 %v1087, %v1025
  %v1089 = vadd.f32 %v1088, %v1026
  %v1090 = vadd.f32 %v1089, %v1027
  %v1091 = vadd.f32 %v1090, %v1028
  %v1092 = vadd.f32 %v1091, %v1029
  %v1093 = vadd.f32 %v1092, %v1030
  %v1094 = vadd.f32 %v1093, %v1031
  %v1095 = vadd.f32 %v1094, %v1032
  %v1096 = vadd.f32 %v1095, %v1033
  %v1097 = vadd.f32 %v1096, %v1034
  %v1098 = vadd.f32 %v1097, %v1035
  %v1099 = vadd.f32 %v1098, %v1036
  %v1100 = vadd.f32 %v1099, %v1037
  %v1101 = vadd.f32 %v1100, %v1038
  %v1102 = vadd.f32 %v1101, %v1039
  %v1103 = vadd.f32 %v1102, %v1040
  %v1104 = vadd.f32 %v1103, %v1041
  %v1105 = vadd.f32 %v1104, %v1042
  %v1106 = vadd.f32 %v1105, %v1043
  %v1107 = vadd.f32 %v1106, %v1044
  %v1108 = vadd.f32 %v1107, %v1045
  %v1109 = vadd.f32 %v1108, %v1046
  %v1110 = vadd.f32 %v1109, %v1047
  %v1111 = vadd.f32 %v1110, %v1048
  %v1112 = vadd.f32 %v1111, %v1049
  %v1113 = vadd.f32 %v1112, %v1050
  %v1114 = vadd.f32 %v1113, %v1051
  %v1115 = vadd.f32 %v1114, %v1052
  %v1116 = vadd.f32 %v1115, %v1053
  %v1117 = vadd.f32 %v1116, %v1054
  %v1118 = vadd.f32 %v1117, %v1055
  %v1119 = vadd.f32 %v1118, %v1056
  %v1120 = vadd.f32 %v1119, %v1057
  %v1121 = vadd.f32 %v1120, %v1058
  %v1122 = vadd.f32 %v1121, %v1059
  %v1123 = vadd.f32 %v1122, %v1060
  %v1124 = vadd.f32 %v1123, %v1061
  %v1125 = vadd.f32 %v1124, %v1062
  %v1126 = vadd.f32 %v1125, %v1063
  %v1127 = vadd.f32 %v1126, %v1064
  %v1128 = vadd.f32 %v1127, %v1065
  %v1129 = vadd.f32 %v1128, %v1066
  %v1130 = vadd.f32 %v1129, %v1067
  %v1131 = vadd.f32 %v1130, %v1068
  %v1132 = vadd.f32 %v1131, %v1069
  %v1133 = vadd.f32 %v1132, %v1070
  %v1134 = vadd.f32 %v1133, %v1071
  %v1135 = vadd.f32 %v1134, %v1072
  %v1136 = vadd.f32 %v1135, %v1073
  %v1137 = vadd.f32 %v1136, %v1074
  %v1138 = vadd.f32 %v1137, %v1075
  %v1139 = vadd.f32 %v1138, %v1076
  %v1140 = vadd.f32 %v1139, %v1077
  %v1141 = vrot.slane %v1140, 4
  %v1142 = vadd.f32 %v1140, %v1141
  %v1143 = vrot.slane %v1142, 2
  %v1144 = vadd.f32 %v1142, %v1143
  %v1145 = vrot.slane %v1144, 1
  %v1146 = vadd.f32 %v1144, %v1145
  %1147 = vst [vmem:[%s4] sm:$0x1] %v1146
  // Predicated region
  $region10: #{double_dilation_forward.3} parent=0 // pred_check
    _
  $region11: #{double_dilation_forward.3} parent=0 // pred_check_branch
    %1149 = sbr.rel (0) target = $region13
  $region12: #{double_dilation_forward.3} parent=0 // pred_region
    _
  $region13: #{double_dilation_forward.3} parent=0 // pred_fallthru
    _
  // Predicated region
  $region14: #{double_dilation_forward.3} parent=0 // pred_check
    _
  $region15: #{double_dilation_forward.3} parent=0 // pred_check_branch
    %1151 = sbr.rel (0) target = $region17
  $region16: #{double_dilation_forward.3} parent=0 // pred_region
    _
  $region17: #{double_dilation_forward.3} parent=0 // pred_fallthru
    _
  // Predicated region
  $region18: #{double_dilation_forward.3} parent=0 // pred_check
    _
  $region19: #{double_dilation_forward.3} parent=0 // pred_check_branch
    %1153 = sbr.rel (0) target = $region21
  $region20: #{double_dilation_forward.3} parent=0 // pred_region
    _
  $region21: #{double_dilation_forward.3} parent=0 // pred_fallthru
    _
  // Predicated region
  $region22: #{double_dilation_forward.3} parent=0 // pred_check
    _
  $region23: #{double_dilation_forward.3} parent=0 // pred_check_branch
    %1155 = sbr.rel (0) target = $region25
  $region24: #{double_dilation_forward.3} parent=0 // pred_region
    _
  $region25: #{double_dilation_forward.3} parent=0 // pred_fallthru
    _
  // Predicated region
  $region26: #{double_dilation_forward.3} parent=0 // pred_check
    _
  $region27: #{double_dilation_forward.3} parent=0 // pred_check_branch
    %1157 = sbr.rel (0) target = $region29
  $region28: #{double_dilation_forward.3} parent=0 // pred_region
    _
  $region29: #{double_dilation_forward.3} parent=0 // pred_fallthru
    _
  // Predicated region
  $region30: #{double_dilation_forward.3} parent=0 // pred_check
    _
  $region31: #{double_dilation_forward.3} parent=0 // pred_check_branch
    %1159 = sbr.rel (0) target = $region33
  $region32: #{double_dilation_forward.3} parent=0 // pred_region
    _
  $region33: #{double_dilation_forward.3} parent=0 // pred_fallthru
    _

// kernel: double_dilation_forward.5
$region0: #{double_dilation_forward.5}
  #allocation0 [shape = 'u32[]', space=smem, size = 0x4, offset = 0x4, fixed_abs, tag = 'smem constant byte address 0x4 - core index']
  #allocation1 [shape = 'u32[144,128]{1,0:T(1,128)}', space=vmem, size = 0x12000, scoped, tag = 'internal scratch']
  %s0 = inlined_call_operand.vmem [shape: bf16[128,128], index: 0, kind: input, shape index: {}]
  %s1 = inlined_call_operand.vmem [shape: f32[1,128], index: 1, kind: input, shape index: {}]
  %s2 = inlined_call_operand.vmem [shape: f32[1,128], index: 2, kind: input, shape index: {}]
  %s3 = inlined_call_operand.vmem [shape: f32[128,128], index: 3, kind: output, shape index: {}]
  %s4 = sld [smem:[#allocation0]]
  $region22: #{double_dilation_forward.5} parent=0
    _
  %s6 = ssub.s32 1, %s4
  %s7 = scalar_select 0, %s6, %s4
  // Predicated region
  $region2: #{double_dilation_forward.5} parent=0 // pred_check
    _
  $region3: #{double_dilation_forward.5} parent=0 // pred_check_branch
    %9 = sbr.rel (0) target = $region5
  $region4: #{double_dilation_forward.5} parent=0 // pred_region
    _
  $region5: #{double_dilation_forward.5} parent=0 // pred_fallthru
    _
  // Predicated region
  $region6: #{double_dilation_forward.5} parent=0 // pred_check
    _
  $region7: #{double_dilation_forward.5} parent=0 // pred_check_branch
    %11 = sbr.rel (0) target = $region9
  $region8: #{double_dilation_forward.5} parent=0 // pred_region
    _
  $region9: #{double_dilation_forward.5} parent=0 // pred_fallthru
    _
  // Predicated region
  $region10: #{double_dilation_forward.5} parent=0 // pred_check
    _
  $region11: #{double_dilation_forward.5} parent=0 // pred_check_branch
    %13 = sbr.rel (0) target = $region13
  $region12: #{double_dilation_forward.5} parent=0 // pred_region
    _
  $region13: #{double_dilation_forward.5} parent=0 // pred_fallthru
    _
  %v14 = vld [vmem:[%s0] sm:$0xf]
  %v15 = vld [vmem:[%s0 + $0x4] sm:$0xf]
  %v16 = vld [vmem:[%s0 + $0x8] sm:$0xf]
  %v17 = vld [vmem:[%s0 + $0xc] sm:$0xf]
  %v18 = vld [vmem:[%s0 + $0x10] sm:$0xf]
  %v19 = vld [vmem:[%s0 + $0x14] sm:$0xf]
  %v20 = vld [vmem:[%s0 + $0x18] sm:$0xf]
  %v21 = vld [vmem:[%s0 + $0x1c] sm:$0xf]
  %v22 = vld [vmem:[%s0 + $0x20] sm:$0xf]
  %v23 = vld [vmem:[%s0 + $0x24] sm:$0xf]
  %v24 = vld [vmem:[%s0 + $0x28] sm:$0xf]
  %v25 = vld [vmem:[%s0 + $0x2c] sm:$0xf]
  %v26 = vld [vmem:[%s0 + $0x30] sm:$0xf]
  %v27 = vld [vmem:[%s0 + $0x34] sm:$0xf]
  %v28 = vld [vmem:[%s0 + $0x38] sm:$0xf]
  %v29 = vld [vmem:[%s0 + $0x3c] sm:$0xf]
  %v30 = vunpack.c.l.bf16 %v14
  %v31 = vunpack.c.l.bf16 %v15
  %v32 = vunpack.c.l.bf16 %v16
  %v33 = vunpack.c.l.bf16 %v17
  %v34 = vunpack.c.l.bf16 %v18
  %v35 = vunpack.c.l.bf16 %v19
  %v36 = vunpack.c.l.bf16 %v20
  %v37 = vunpack.c.l.bf16 %v21
  %v38 = vunpack.c.l.bf16 %v22
  %v39 = vunpack.c.l.bf16 %v23
  %v40 = vunpack.c.l.bf16 %v24
  %v41 = vunpack.c.l.bf16 %v25
  %v42 = vunpack.c.l.bf16 %v26
  %v43 = vunpack.c.l.bf16 %v27
  %v44 = vunpack.c.l.bf16 %v28
  %v45 = vunpack.c.l.bf16 %v29
  %v46 = vld [vmem:[%s1] sm:$0x1]
  %v48 = vlaneseq
  %v49 = vshrl.u32 %v48, 7
  %v50 = vsub.s32 0, %v49
  %v51 = vrot.slane %v46, %v50
  %v53 = vmul.f32 %v30, %v51
  %v54 = vmul.f32 %v31, %v51
  %v55 = vmul.f32 %v32, %v51
  %v56 = vmul.f32 %v33, %v51
  %v57 = vmul.f32 %v34, %v51
  %v58 = vmul.f32 %v35, %v51
  %v59 = vmul.f32 %v36, %v51
  %v60 = vmul.f32 %v37, %v51
  %v61 = vmul.f32 %v38, %v51
  %v62 = vmul.f32 %v39, %v51
  %v63 = vmul.f32 %v40, %v51
  %v64 = vmul.f32 %v41, %v51
  %v65 = vmul.f32 %v42, %v51
  %v66 = vmul.f32 %v43, %v51
  %v67 = vmul.f32 %v44, %v51
  %v68 = vmul.f32 %v45, %v51
  %v69 = vld [vmem:[%s2] sm:$0x1]
  %v71 = vlaneseq
  %v72 = vshrl.u32 %v71, 7
  %v73 = vsub.s32 0, %v72
  %v74 = vrot.slane %v69, %v73
  %v76 = vadd.f32 %v53, %v74
  %v77 = vadd.f32 %v54, %v74
  %v78 = vadd.f32 %v55, %v74
  %v79 = vadd.f32 %v56, %v74
  %v80 = vadd.f32 %v57, %v74
  %v81 = vadd.f32 %v58, %v74
  %v82 = vadd.f32 %v59, %v74
  %v83 = vadd.f32 %v60, %v74
  %v84 = vadd.f32 %v61, %v74
  %v85 = vadd.f32 %v62, %v74
  %v86 = vadd.f32 %v63, %v74
  %v87 = vadd.f32 %v64, %v74
  %v88 = vadd.f32 %v65, %v74
  %v89 = vadd.f32 %v66, %v74
  %v90 = vadd.f32 %v67, %v74
  %v91 = vadd.f32 %v68, %v74
  %v92 = vmax.f32 %v76, 0.0
  %v93 = vmax.f32 %v77, 0.0
  %v94 = vmax.f32 %v78, 0.0
  %v95 = vmax.f32 %v79, 0.0
  %v96 = vmax.f32 %v80, 0.0
  %v97 = vmax.f32 %v81, 0.0
  %v98 = vmax.f32 %v82, 0.0
  %v99 = vmax.f32 %v83, 0.0
  %v100 = vmax.f32 %v84, 0.0
  %v101 = vmax.f32 %v85, 0.0
  %v102 = vmax.f32 %v86, 0.0
  %v103 = vmax.f32 %v87, 0.0
  %v104 = vmax.f32 %v88, 0.0
  %v105 = vmax.f32 %v89, 0.0
  %v106 = vmax.f32 %v90, 0.0
  %v107 = vmax.f32 %v91, 0.0
  %108 = vst [vmem:[%s3] sm:$0xff] %v92
  %109 = vst [vmem:[%s3 + $0x8] sm:$0xff] %v93
  %110 = vst [vmem:[%s3 + $0x10] sm:$0xff] %v94
  %111 = vst [vmem:[%s3 + $0x18] sm:$0xff] %v95
  %112 = vst [vmem:[%s3 + $0x20] sm:$0xff] %v96
  %113 = vst [vmem:[%s3 + $0x28] sm:$0xff] %v97
  %114 = vst [vmem:[%s3 + $0x30] sm:$0xff] %v98
  %115 = vst [vmem:[%s3 + $0x38] sm:$0xff] %v99
  %116 = vst [vmem:[%s3 + $0x40] sm:$0xff] %v100
  %117 = vst [vmem:[%s3 + $0x48] sm:$0xff] %v101
  %118 = vst [vmem:[%s3 + $0x50] sm:$0xff] %v102
  %119 = vst [vmem:[%s3 + $0x58] sm:$0xff] %v103
  %120 = vst [vmem:[%s3 + $0x60] sm:$0xff] %v104
  %121 = vst [vmem:[%s3 + $0x68] sm:$0xff] %v105
  %122 = vst [vmem:[%s3 + $0x70] sm:$0xff] %v106
  %123 = vst [vmem:[%s3 + $0x78] sm:$0xff] %v107
  // Predicated region
  $region14: #{double_dilation_forward.5} parent=0 // pred_check
    _
  $region15: #{double_dilation_forward.5} parent=0 // pred_check_branch
    %125 = sbr.rel (0) target = $region17
  $region16: #{double_dilation_forward.5} parent=0 // pred_region
    _
  $region17: #{double_dilation_forward.5} parent=0 // pred_fallthru
    _
  // Predicated region
  $region18: #{double_dilation_forward.5} parent=0 // pred_check
    _
  $region19: #{double_dilation_forward.5} parent=0 // pred_check_branch
    %127 = sbr.rel (0) target = $region21
  $region20: #{double_dilation_forward.5} parent=0 // pred_region
    _
  $region21: #{double_dilation_forward.5} parent=0 // pred_fallthru
    _

// kernel: double_dilation_forward.4
$region0: #{double_dilation_forward.4}
  #allocation0 [shape = 'u32[]', space=smem, size = 0x4, offset = 0x4, fixed_abs, tag = 'smem constant byte address 0x4 - core index']
  #allocation1 [shape = 'u32[144,128]{1,0:T(1,128)}', space=vmem, size = 0x12000, scoped, tag = 'internal scratch']
  %s0 = inlined_call_operand.vmem [shape: bf16[128,128], index: 0, kind: input, shape index: {}]
  %s1 = inlined_call_operand.vmem [shape: bf16[128,128], index: 1, kind: input, shape index: {}]
  %s2 = inlined_call_operand.vmem [shape: bf16[128,128], index: 2, kind: output, shape index: {0}]
  %s3 = inlined_call_operand.vmem [shape: f32[1,1,128], index: 3, kind: output, shape index: {1}]
  %s4 = inlined_call_operand.vmem [shape: f32[1,1,128], index: 4, kind: output, shape index: {2}]
  %5 = xla_tuple %s2, %s3, %s4
  %s6 = sld [smem:[#allocation0]]
  $region34: #{double_dilation_forward.4} parent=0
    _
  %s8 = ssub.s32 1, %s6
  %s9 = scalar_select 0, %s8, %s6
  // Predicated region
  $region2: #{double_dilation_forward.4} parent=0 // pred_check
    _
  $region3: #{double_dilation_forward.4} parent=0 // pred_check_branch
    %11 = sbr.rel (0) target = $region5
  $region4: #{double_dilation_forward.4} parent=0 // pred_region
    _
  $region5: #{double_dilation_forward.4} parent=0 // pred_fallthru
    _
  // Predicated region
  $region6: #{double_dilation_forward.4} parent=0 // pred_check
    _
  $region7: #{double_dilation_forward.4} parent=0 // pred_check_branch
    %13 = sbr.rel (0) target = $region9
  $region8: #{double_dilation_forward.4} parent=0 // pred_region
    _
  $region9: #{double_dilation_forward.4} parent=0 // pred_fallthru
    _
  %v15 = vld [vmem:[%s0] sm:$0xf]
  %v16 = vld [vmem:[%s0 + $0x4] sm:$0xf]
  %v17 = vld [vmem:[%s0 + $0x8] sm:$0xf]
  %v18 = vld [vmem:[%s0 + $0xc] sm:$0xf]
  %v19 = vld [vmem:[%s0 + $0x10] sm:$0xf]
  %v20 = vld [vmem:[%s0 + $0x14] sm:$0xf]
  %v21 = vld [vmem:[%s0 + $0x18] sm:$0xf]
  %v22 = vld [vmem:[%s0 + $0x1c] sm:$0xf]
  %v23 = vld [vmem:[%s0 + $0x20] sm:$0xf]
  %v24 = vld [vmem:[%s0 + $0x24] sm:$0xf]
  %v25 = vld [vmem:[%s0 + $0x28] sm:$0xf]
  %v26 = vld [vmem:[%s0 + $0x2c] sm:$0xf]
  %v27 = vld [vmem:[%s0 + $0x30] sm:$0xf]
  %v28 = vld [vmem:[%s0 + $0x34] sm:$0xf]
  %v29 = vld [vmem:[%s0 + $0x38] sm:$0xf]
  %v30 = vld [vmem:[%s0 + $0x3c] sm:$0xf]
  %v31 = vld [vmem:[%s1] sm:$0xf]
  %v32 = vld [vmem:[%s1 + $0x4] sm:$0xf]
  %v33 = vld [vmem:[%s1 + $0x8] sm:$0xf]
  %v34 = vld [vmem:[%s1 + $0xc] sm:$0xf]
  %v35 = vld [vmem:[%s1 + $0x10] sm:$0xf]
  %v36 = vld [vmem:[%s1 + $0x14] sm:$0xf]
  %v37 = vld [vmem:[%s1 + $0x18] sm:$0xf]
  %v38 = vld [vmem:[%s1 + $0x1c] sm:$0xf]
  %v39 = vld [vmem:[%s1 + $0x20] sm:$0xf]
  %v40 = vld [vmem:[%s1 + $0x24] sm:$0xf]
  %v41 = vld [vmem:[%s1 + $0x28] sm:$0xf]
  %v42 = vld [vmem:[%s1 + $0x2c] sm:$0xf]
  %v43 = vld [vmem:[%s1 + $0x30] sm:$0xf]
  %v44 = vld [vmem:[%s1 + $0x34] sm:$0xf]
  %v45 = vld [vmem:[%s1 + $0x38] sm:$0xf]
  %v46 = vld [vmem:[%s1 + $0x3c] sm:$0xf]
  %v63 = vunpack.c.l.b16 %v15
  %v64 = vunpack.c.l.b16 %v16
  %v65 = vunpack.c.l.b16 %v17
  %v66 = vunpack.c.l.b16 %v18
  %v67 = vunpack.c.l.b16 %v19
  %v68 = vunpack.c.l.b16 %v20
  %v69 = vunpack.c.l.b16 %v21
  %v70 = vunpack.c.l.b16 %v22
  %v71 = vunpack.c.l.b16 %v23
  %v72 = vunpack.c.l.b16 %v24
  %v73 = vunpack.c.l.b16 %v25
  %v74 = vunpack.c.l.b16 %v26
  %v75 = vunpack.c.l.b16 %v27
  %v76 = vunpack.c.l.b16 %v28
  %v77 = vunpack.c.l.b16 %v29
  %v78 = vunpack.c.l.b16 %v30
  %v79 = vpack.c.b16 %v64, %v63
  %v80 = vpack.c.b16 %v66, %v65
  %v81 = vpack.c.b16 %v68, %v67
  %v82 = vpack.c.b16 %v70, %v69
  %v83 = vpack.c.b16 %v72, %v71
  %v84 = vpack.c.b16 %v74, %v73
  %v85 = vpack.c.b16 %v76, %v75
  %v86 = vpack.c.b16 %v78, %v77
  %v111 = vunpack.c.l.b16 %v31
  %v112 = vunpack.c.l.b16 %v32
  %v113 = vunpack.c.l.b16 %v33
  %v114 = vunpack.c.l.b16 %v34
  %v115 = vunpack.c.l.b16 %v35
  %v116 = vunpack.c.l.b16 %v36
  %v117 = vunpack.c.l.b16 %v37
  %v118 = vunpack.c.l.b16 %v38
  %v119 = vunpack.c.l.b16 %v39
  %v120 = vunpack.c.l.b16 %v40
  %v121 = vunpack.c.l.b16 %v41
  %v122 = vunpack.c.l.b16 %v42
  %v123 = vunpack.c.l.b16 %v43
  %v124 = vunpack.c.l.b16 %v44
  %v125 = vunpack.c.l.b16 %v45
  %v126 = vunpack.c.l.b16 %v46
  %v127 = vpack.c.b16 %v112, %v111
  %v128 = vpack.c.b16 %v114, %v113
  %v129 = vpack.c.b16 %v116, %v115
  %v130 = vpack.c.b16 %v118, %v117
  %v131 = vpack.c.b16 %v120, %v119
  %v132 = vpack.c.b16 %v122, %v121
  %v133 = vpack.c.b16 %v124, %v123
  %v134 = vpack.c.b16 %v126, %v125
  %143 = vmatprep.subr.bf16.mxu0 0
  %144 = vmatpush1.bf16.msra.mxu0 %v134
  %145 = vmatprep.subr.bf16.mxu0 0
  %146 = vmatpush1.bf16.msra.mxu0 %v133
  %147 = vmatprep.subr.bf16.mxu0 0
  %148 = vmatpush1.bf16.msra.mxu0 %v132
  %149 = vmatprep.subr.bf16.mxu0 0
  %150 = vmatpush1.bf16.msra.mxu0 %v131
  %151 = vmatprep.subr.bf16.mxu0 0
  %152 = vmatpush1.bf16.msra.mxu0 %v130
  %153 = vmatprep.subr.bf16.mxu0 0
  %154 = vmatpush1.bf16.msra.mxu0 %v129
  %155 = vmatprep.subr.bf16.mxu0 0
  %156 = vmatpush1.bf16.msra.mxu0 %v128
  %157 = vmatprep.subr.bf16.mxu0 0
  %158 = vmatpush1.bf16.msra.mxu0 %v127
  %159 = vmatprep.subr.bf16.mxu0 0
  %160 = vmatpush2.bf16.msra.mxu0 0
  %161 = vmatprep.subr.bf16.mxu0 0
  %162 = vmatpush2.bf16.msra.mxu0 0
  %163 = vmatprep.subr.bf16.mxu0 0
  %164 = vmatpush2.bf16.msra.mxu0 0
  %165 = vmatprep.subr.bf16.mxu0 0
  %166 = vmatpush2.bf16.msra.mxu0 0
  %167 = vmatprep.subr.bf16.mxu0 0
  %168 = vmatpush2.bf16.msra.mxu0 0
  %169 = vmatprep.subr.bf16.mxu0 0
  %170 = vmatpush2.bf16.msra.mxu0 0
  %171 = vmatprep.subr.bf16.mxu0 0
  %172 = vmatpush2.bf16.msra.mxu0 0
  %173 = vmatprep.subr.bf16.mxu0 0
  %174 = vmatpush2.bf16.msra.mxu0 0
  %175 = vmatprep.mubr.bf16.mxu0 0
  %176 = vmatmul.mubr.bf16.gmra.mxu0 %v79
  %v177 = vpop.f32.mrf.mxu0
  %v178 = vadd.f32 0.0, %v177
  %v179 = vpop.f32.mrf.mxu0
  %v180 = vpop.f32.mrf.mxu0
  %v181 = vadd.f32 0.0, %v180
  %v182 = vpop.f32.mrf.mxu0
  %183 = vmatprep.mubr.bf16.mxu0 0
  %184 = vmatmul.mubr.bf16.gmra.mxu0 %v80
  %v185 = vpop.f32.mrf.mxu0
  %v186 = vadd.f32 0.0, %v185
  %v187 = vpop.f32.mrf.mxu0
  %v188 = vpop.f32.mrf.mxu0
  %v189 = vadd.f32 0.0, %v188
  %v190 = vpop.f32.mrf.mxu0
  %191 = vmatprep.mubr.bf16.mxu0 0
  %192 = vmatmul.mubr.bf16.gmra.mxu0 %v81
  %v193 = vpop.f32.mrf.mxu0
  %v194 = vadd.f32 0.0, %v193
  %v195 = vpop.f32.mrf.mxu0
  %v196 = vpop.f32.mrf.mxu0
  %v197 = vadd.f32 0.0, %v196
  %v198 = vpop.f32.mrf.mxu0
  %199 = vmatprep.mubr.bf16.mxu0 0
  %200 = vmatmul.mubr.bf16.gmra.mxu0 %v82
  %v201 = vpop.f32.mrf.mxu0
  %v202 = vadd.f32 0.0, %v201
  %v203 = vpop.f32.mrf.mxu0
  %v204 = vpop.f32.mrf.mxu0
  %v205 = vadd.f32 0.0, %v204
  %v206 = vpop.f32.mrf.mxu0
  %207 = vmatprep.mubr.bf16.mxu0 0
  %208 = vmatmul.mubr.bf16.gmra.mxu0 %v83
  %v209 = vpop.f32.mrf.mxu0
  %v210 = vadd.f32 0.0, %v209
  %v211 = vpop.f32.mrf.mxu0
  %v212 = vpop.f32.mrf.mxu0
  %v213 = vadd.f32 0.0, %v212
  %v214 = vpop.f32.mrf.mxu0
  %215 = vmatprep.mubr.bf16.mxu0 0
  %216 = vmatmul.mubr.bf16.gmra.mxu0 %v84
  %v217 = vpop.f32.mrf.mxu0
  %v218 = vadd.f32 0.0, %v217
  %v219 = vpop.f32.mrf.mxu0
  %v220 = vpop.f32.mrf.mxu0
  %v221 = vadd.f32 0.0, %v220
  %v222 = vpop.f32.mrf.mxu0
  %223 = vmatprep.mubr.bf16.mxu0 0
  %224 = vmatmul.mubr.bf16.gmra.mxu0 %v85
  %v225 = vpop.f32.mrf.mxu0
  %v226 = vadd.f32 0.0, %v225
  %v227 = vpop.f32.mrf.mxu0
  %v228 = vpop.f32.mrf.mxu0
  %v229 = vadd.f32 0.0, %v228
  %v230 = vpop.f32.mrf.mxu0
  %231 = vmatprep.mubr.bf16.mxu0 0
  %232 = vmatmul.mubr.bf16.gmra.mxu0 %v86
  %v233 = vpop.f32.mrf.mxu0
  %v234 = vadd.f32 0.0, %v233
  %v235 = vpop.f32.mrf.mxu0
  %v236 = vpop.f32.mrf.mxu0
  %v237 = vadd.f32 0.0, %v236
  %v238 = vpop.f32.mrf.mxu0
  %239 = vdwg.mxu0
  %v240 = vpack.c.bf16 %v181, %v178
  %v241 = vpack.c.bf16 %v189, %v186
  %v242 = vpack.c.bf16 %v197, %v194
  %v243 = vpack.c.bf16 %v205, %v202
  %v244 = vpack.c.bf16 %v213, %v210
  %v245 = vpack.c.bf16 %v221, %v218
  %v246 = vpack.c.bf16 %v229, %v226
  %v247 = vpack.c.bf16 %v237, %v234
  %v256 = vunpack.c.l.b16 %v240
  %v257 = vunpack.c.h.b16 %v240
  %v258 = vunpack.c.l.b16 %v241
  %v259 = vunpack.c.h.b16 %v241
  %v260 = vunpack.c.l.b16 %v242
  %v261 = vunpack.c.h.b16 %v242
  %v262 = vunpack.c.l.b16 %v243
  %v263 = vunpack.c.h.b16 %v243
  %v264 = vunpack.c.l.b16 %v244
  %v265 = vunpack.c.h.b16 %v244
  %v266 = vunpack.c.l.b16 %v245
  %v267 = vunpack.c.h.b16 %v245
  %v268 = vunpack.c.l.b16 %v246
  %v269 = vunpack.c.h.b16 %v246
  %v270 = vunpack.c.l.b16 %v247
  %v271 = vunpack.c.h.b16 %v247
  %v272 = vpack.c.b16 %v256, %v256
  %v273 = vpack.c.b16 %v257, %v257
  %v274 = vpack.c.b16 %v258, %v258
  %v275 = vpack.c.b16 %v259, %v259
  %v276 = vpack.c.b16 %v260, %v260
  %v277 = vpack.c.b16 %v261, %v261
  %v278 = vpack.c.b16 %v262, %v262
  %v279 = vpack.c.b16 %v263, %v263
  %v280 = vpack.c.b16 %v264, %v264
  %v281 = vpack.c.b16 %v265, %v265
  %v282 = vpack.c.b16 %v266, %v266
  %v283 = vpack.c.b16 %v267, %v267
  %v284 = vpack.c.b16 %v268, %v268
  %v285 = vpack.c.b16 %v269, %v269
  %v286 = vpack.c.b16 %v270, %v270
  %v287 = vpack.c.b16 %v271, %v271
  %304 = vst [vmem:[%s2] sm:$0xf] %v272
  %305 = vst [vmem:[%s2 + $0x4] sm:$0xf] %v273
  %306 = vst [vmem:[%s2 + $0x8] sm:$0xf] %v274
  %307 = vst [vmem:[%s2 + $0xc] sm:$0xf] %v275
  %308 = vst [vmem:[%s2 + $0x10] sm:$0xf] %v276
  %309 = vst [vmem:[%s2 + $0x14] sm:$0xf] %v277
  %310 = vst [vmem:[%s2 + $0x18] sm:$0xf] %v278
  %311 = vst [vmem:[%s2 + $0x1c] sm:$0xf] %v279
  %312 = vst [vmem:[%s2 + $0x20] sm:$0xf] %v280
  %313 = vst [vmem:[%s2 + $0x24] sm:$0xf] %v281
  %314 = vst [vmem:[%s2 + $0x28] sm:$0xf] %v282
  %315 = vst [vmem:[%s2 + $0x2c] sm:$0xf] %v283
  %316 = vst [vmem:[%s2 + $0x30] sm:$0xf] %v284
  %317 = vst [vmem:[%s2 + $0x34] sm:$0xf] %v285
  %318 = vst [vmem:[%s2 + $0x38] sm:$0xf] %v286
  %319 = vst [vmem:[%s2 + $0x3c] sm:$0xf] %v287
  %v320 = vadd.f32 %v178, %v181
  %v321 = vadd.f32 %v320, %v186
  %v322 = vadd.f32 %v321, %v189
  %v323 = vadd.f32 %v322, %v194
  %v324 = vadd.f32 %v323, %v197
  %v325 = vadd.f32 %v324, %v202
  %v326 = vadd.f32 %v325, %v205
  %v327 = vadd.f32 %v326, %v210
  %v328 = vadd.f32 %v327, %v213
  %v329 = vadd.f32 %v328, %v218
  %v330 = vadd.f32 %v329, %v221
  %v331 = vadd.f32 %v330, %v226
  %v332 = vadd.f32 %v331, %v229
  %v333 = vadd.f32 %v332, %v234
  %v334 = vadd.f32 %v333, %v237
  %v335 = vrot.slane %v334, 4
  %v336 = vadd.f32 %v334, %v335
  %v337 = vrot.slane %v336, 2
  %v338 = vadd.f32 %v336, %v337
  %v339 = vrot.slane %v338, 1
  %v340 = vadd.f32 %v338, %v339
  %341 = vst [vmem:[%s3] sm:$0x1] %v340
  %v342 = vmul.f32 %v178, %v178
  %v343 = vmul.f32 %v181, %v181
  %v344 = vmul.f32 %v186, %v186
  %v345 = vmul.f32 %v189, %v189
  %v346 = vmul.f32 %v194, %v194
  %v347 = vmul.f32 %v197, %v197
  %v348 = vmul.f32 %v202, %v202
  %v349 = vmul.f32 %v205, %v205
  %v350 = vmul.f32 %v210, %v210
  %v351 = vmul.f32 %v213, %v213
  %v352 = vmul.f32 %v218, %v218
  %v353 = vmul.f32 %v221, %v221
  %v354 = vmul.f32 %v226, %v226
  %v355 = vmul.f32 %v229, %v229
  %v356 = vmul.f32 %v234, %v234
  %v357 = vmul.f32 %v237, %v237
  %v358 = vadd.f32 %v342, %v343
  %v359 = vadd.f32 %v358, %v344
  %v360 = vadd.f32 %v359, %v345
  %v361 = vadd.f32 %v360, %v346
  %v362 = vadd.f32 %v361, %v347
  %v363 = vadd.f32 %v362, %v348
  %v364 = vadd.f32 %v363, %v349
  %v365 = vadd.f32 %v364, %v350
  %v366 = vadd.f32 %v365, %v351
  %v367 = vadd.f32 %v366, %v352
  %v368 = vadd.f32 %v367, %v353
  %v369 = vadd.f32 %v368, %v354
  %v370 = vadd.f32 %v369, %v355
  %v371 = vadd.f32 %v370, %v356
  %v372 = vadd.f32 %v371, %v357
  %v373 = vrot.slane %v372, 4
  %v374 = vadd.f32 %v372, %v373
  %v375 = vrot.slane %v374, 2
  %v376 = vadd.f32 %v374, %v375
  %v377 = vrot.slane %v376, 1
  %v378 = vadd.f32 %v376, %v377
  %379 = vst [vmem:[%s4] sm:$0x1] %v378
  // Predicated region
  $region10: #{double_dilation_forward.4} parent=0 // pred_check
    _
  $region11: #{double_dilation_forward.4} parent=0 // pred_check_branch
    %381 = sbr.rel (0) target = $region13
  $region12: #{double_dilation_forward.4} parent=0 // pred_region
    _
  $region13: #{double_dilation_forward.4} parent=0 // pred_fallthru
    _
  // Predicated region
  $region14: #{double_dilation_forward.4} parent=0 // pred_check
    _
  $region15: #{double_dilation_forward.4} parent=0 // pred_check_branch
    %383 = sbr.rel (0) target = $region17
  $region16: #{double_dilation_forward.4} parent=0 // pred_region
    _
  $region17: #{double_dilation_forward.4} parent=0 // pred_fallthru
    _
  // Predicated region
  $region18: #{double_dilation_forward.4} parent=0 // pred_check
    _
  $region19: #{double_dilation_forward.4} parent=0 // pred_check_branch
    %385 = sbr.rel (0) target = $region21
  $region20: #{double_dilation_forward.4} parent=0 // pred_region
    _
  $region21: #{double_dilation_forward.4} parent=0 // pred_fallthru
    _
  // Predicated region
  $region22: #{double_dilation_forward.4} parent=0 // pred_check
    _
  $region23: #{double_dilation_forward.4} parent=0 // pred_check_branch
    %387 = sbr.rel (0) target = $region25
  $region24: #{double_dilation_forward.4} parent=0 // pred_region
    _
  $region25: #{double_dilation_forward.4} parent=0 // pred_fallthru
    _
  // Predicated region
  $region26: #{double_dilation_forward.4} parent=0 // pred_check
    _
  $region27: #{double_dilation_forward.4} parent=0 // pred_check_branch
    %389 = sbr.rel (0) target = $region29
  $region28: #{double_dilation_forward.4} parent=0 // pred_region
    _
  $region29: #{double_dilation_forward.4} parent=0 // pred_fallthru
    _
  // Predicated region
  $region30: #{double_dilation_forward.4} parent=0 // pred_check
    _
  $region31: #{double_dilation_forward.4} parent=0 // pred_check_branch
    %391 = sbr.rel (0) target = $region33
  $region32: #{double_dilation_forward.4} parent=0 // pred_region
    _
  $region33: #{double_dilation_forward.4} parent=0 // pred_fallthru
    _

</llo_original>
